<compile_context>
chip_gen: v7x
topology: tpu7x:2x2x1
jax: 0.10.0
libtpu: 0.0.40
codegen_flags: <defaults>
</compile_context>

<pallas_src>
import functools

import jax
import jax.numpy as jnp
from jax.experimental import pallas as pl
from jax.experimental.pallas import tpu as pltpu

EPS = 1e-8  # matches eps=1e-8 in the PyTorch TCN norms


# ------------------------------------------------------------------- kernel --

def _tasnet_kernel(alphas_ref, xh_ref, wtop_ref, wbot_ref, lng_ref, lnb_ref,
                   bnw_ref, bnb_ref, w1_ref, b1_ref, g1_ref, be1_ref,
                   wd_ref, bd_ref, g2_ref, be2_ref, wrs_ref, brs_ref,
                   outw_ref, outb_ref, decw_ref, o_ref, dw_ref,
                   *, dilations, K, L, E, H, S):
    f32, bf16 = jnp.float32, jnp.bfloat16

    def prelu(x, a):
        return jnp.where(x >= 0.0, x, a * x)

    def gln(x, g, b):                       # GroupNorm(1, C): global layer norm
        m = jnp.mean(x)
        v = jnp.mean(jnp.square(x - m))
        return (x - m) * jax.lax.rsqrt(v + EPS) * g + b

    # ---- encoder: framed conv as two half-window matmuls (win == 2*stride) --
    xh = xh_ref[0]                                            # (L+1, stride) f32
    enc = (jnp.dot(xh[0:L, :].astype(bf16), wtop_ref[...],
                   preferred_element_type=f32) +
           jnp.dot(xh[1:L + 1, :].astype(bf16), wbot_ref[...],
                   preferred_element_type=f32))               # (L, E) f32

    # ---- TCN front: gLN + bottleneck 1x1 (res || skip packed on lanes) ------
    h0 = gln(enc, lng_ref[...], lnb_ref[...])
    hs = jnp.dot(h0.astype(bf16), bnw_ref[...],
                 preferred_element_type=f32) + bnb_ref[...]   # (L, 2F) f32

    # ---- TCN blocks: statically unrolled, weights resident in VMEM ----------
    for j, d in enumerate(dilations):
        a1 = alphas_ref[j, 0]
        a2 = alphas_ref[j, 1]

        # 1x1 conv (zero rows in w1 mask the skip lanes of hs) + PReLU + gLN
        y = jnp.dot(hs.astype(bf16), w1_ref[j],
                    preferred_element_type=f32) + b1_ref[j]   # (L, H)
        y = gln(prelu(y, a1), g1_ref[j], be1_ref[j])

        # depthwise dilated conv, padding = d, via zero-initialised scratch
        dw_ref[...] = jnp.zeros_like(dw_ref)
        dw_ref[d:d + L, :] = y
        wd = wd_ref[j]                                        # (K, H) f32
        y = jnp.zeros((L, H), f32) + bd_ref[j]
        for k in range(K):
            y = y + dw_ref[k * d:k * d + L, :] * wd[k:k + 1, :]
        y = gln(prelu(y, a2), g2_ref[j], be2_ref[j])

        # fused residual + skip update: one (L,H)@(H,2F) matmul, one add
        hs = hs + jnp.dot(y.astype(bf16), wrs_ref[j],
                          preferred_element_type=f32) + brs_ref[j]

    # ---- output head: PReLU + 1x1 (zero rows in out_w kill residual lanes) --
    out_alpha = alphas_ref[len(dilations), 0]
    logits = jnp.dot(prelu(hs, out_alpha).astype(bf16), outw_ref[...],
                     preferred_element_type=f32) + outb_ref[...]   # (L, S*E)

    # ---- sigmoid masks + decoder frame matmul (enc stays resident) ----------
    for s in range(S):
        mask = jax.nn.sigmoid(logits[:, s * E:(s + 1) * E])        # (L, E)
        dec = jnp.dot((enc * mask).astype(bf16), decw_ref[...],
                      preferred_element_type=f32)                  # (L, win)
        o_ref[0, s] = dec


def _tasnet_fused_call(xh, p, dims, dilations, *, L, win, stride):
    B = xh.shape[0]
    E, H, K, NB, S = dims["E"], dims["H"], dims["K"], dims["NB"], dims["S"]
    max_d = max(dilations)

    kern = functools.partial(_tasnet_kernel, dilations=tuple(dilations),
                             K=K, L=L, E=E, H=H, S=S)

    def full(arr):
        nd = arr.ndim
        return pl.BlockSpec(arr.shape, lambda i, _n=nd: (0,) * _n)

    in_specs = [
        pl.BlockSpec((NB + 1, 2), lambda i: (0, 0),
                     memory_space=pltpu.MemorySpace.SMEM),          # alphas
        pl.BlockSpec((1, L + 1, stride), lambda i: (i, 0, 0)),       # xh
        full(p["wtop"]), full(p["wbot"]),
        full(p["ln_g"]), full(p["ln_b"]),
        full(p["bn_wz"]), full(p["bn_bz"]),
        full(p["w1z"]), full(p["b1"]), full(p["g1"]), full(p["be1"]),
        full(p["wd"]), full(p["bd"]), full(p["g2"]), full(p["be2"]),
        full(p["wrs"]), full(p["brs"]),
        full(p["out_wz"]), full(p["out_b"]), full(p["dec_w"]),
    ]
    return pl.pallas_call(
        kern,
        out_shape=jax.ShapeDtypeStruct((B, S, L, win), jnp.float32),
        grid=(B,),
        in_specs=in_specs,
        out_specs=pl.BlockSpec((1, S, L, win), lambda i: (i, 0, 0, 0)),
        scratch_shapes=[pltpu.VMEM((L + 2 * max_d, H), jnp.float32)],
        compiler_params=pltpu.CompilerParams(
            dimension_semantics=("parallel",)),
    )(p["alphas"], xh, p["wtop"], p["wbot"], p["ln_g"], p["ln_b"],
      p["bn_wz"], p["bn_bz"], p["w1z"], p["b1"], p["g1"], p["be1"],
      p["wd"], p["bd"], p["g2"], p["be2"], p["wrs"], p["brs"],
      p["out_wz"], p["out_b"], p["dec_w"])


# --------------------------------------------------------------- parameters --

def init_tasnet_params(key, *, enc_dim, feature_dim, win, layer, stack,
                       kernel, num_spk, dilation_factor):
    """Deterministic synthetic weights with the exact PyTorch module shapes."""
    hidden = feature_dim * 4
    keys = iter(jax.random.split(key, 16 + 16 * layer * stack))

    def nrm(shape, scale=0.1):
        return (scale * jax.random.normal(next(keys), shape)).astype(jnp.float32)

    params = {
        "enc_w": nrm((enc_dim, 1, win)),            # Conv1d(1, enc_dim, win)
        "dec_w": nrm((enc_dim, 1, win)),            # ConvTranspose1d(enc_dim,1,win)
        "ln_g": 1.0 + nrm((enc_dim,)), "ln_b": nrm((enc_dim,)),   # GroupNorm(1,enc)
        "bn_w": nrm((feature_dim, enc_dim, 1)), "bn_b": nrm((feature_dim,)),
        "out_alpha": 0.25,                          # PReLU in TCN output head
        "out_w": nrm((enc_dim * num_spk, feature_dim, 1)),
        "out_b": nrm((enc_dim * num_spk,)),
        "blocks": [],
    }
    dilations = []
    for _s in range(stack):
        for i in range(layer):
            dilations.append(dilation_factor ** i)
            params["blocks"].append(dict(
                w1=nrm((hidden, feature_dim, 1)), b1=nrm((hidden,)),
                alpha1=0.25, g1=1.0 + nrm((hidden,)), be1=nrm((hidden,)),
                wd=nrm((hidden, 1, kernel)), bd=nrm((hidden,)),
                alpha2=0.25, g2=1.0 + nrm((hidden,)), be2=nrm((hidden,)),
                wres=nrm((feature_dim, hidden, 1)), bres=nrm((feature_dim,)),
                wskip=nrm((feature_dim, hidden, 1)), bskip=nrm((feature_dim,)),
            ))
    return params, dilations


def _pack_params(params, *, enc_dim, num_spk, win, stride):
    """Pre-transpose / pad / concatenate PyTorch-shaped weights for the kernel."""
    f32, bf16 = jnp.float32, jnp.bfloat16
    E, S = enc_dim, num_spk
    F = params["bn_w"].shape[0]
    H = params["blocks"][0]["w1"].shape[0]
    K = params["blocks"][0]["wd"].shape[2]
    NB = len(params["blocks"])
    F2 = 2 * F

    w_enc = params["enc_w"][:, 0, :].T.astype(f32)            # (win, E)
    p = dict(
        wtop=w_enc[:stride].astype(bf16),                      # (stride, E)
        wbot=w_enc[stride:].astype(bf16),
        ln_g=params["ln_g"].reshape(1, E).astype(f32),
        ln_b=params["ln_b"].reshape(1, E).astype(f32),
        # bottleneck output packed as [res | skip(=0)] on lanes
        bn_wz=jnp.concatenate([params["bn_w"][:, :, 0].T,
                               jnp.zeros((E, F), f32)], axis=1).astype(bf16),
        bn_bz=jnp.concatenate([params["bn_b"],
                               jnp.zeros((F,), f32)]).reshape(1, F2).astype(f32),
        # output head reads only the skip lanes (zero rows mask residual lanes)
        out_wz=jnp.concatenate([jnp.zeros((F, S * E), f32),
                                params["out_w"][:, :, 0].T], axis=0).astype(bf16),
        out_b=params["out_b"].reshape(1, S * E).astype(f32),
        dec_w=params["dec_w"][:, 0, :].astype(bf16),           # (E, win)
    )

    w1z, b1, g1, be1, wd, bd, g2, be2, wrs, brs, alphas = ([] for _ in range(11))
    for blk in params["blocks"]:
        w1z.append(jnp.concatenate([blk["w1"][:, :, 0].T,
                                    jnp.zeros((F, H), f32)], axis=0))   # (2F, H)
        b1.append(blk["b1"].reshape(1, H))
        g1.append(blk["g1"].reshape(1, H)); be1.append(blk["be1"].reshape(1, H))
        wd.append(blk["wd"][:, 0, :].T)                                  # (K, H)
        bd.append(blk["bd"].reshape(1, H))
        g2.append(blk["g2"].reshape(1, H)); be2.append(blk["be2"].reshape(1, H))
        wrs.append(jnp.concatenate([blk["wres"][:, :, 0].T,
                                    blk["wskip"][:, :, 0].T], axis=1))   # (H, 2F)
        brs.append(jnp.concatenate([blk["bres"], blk["bskip"]]).reshape(1, F2))
        alphas.append([blk["alpha1"], blk["alpha2"]])
    alphas.append([params["out_alpha"], 0.0])

    p.update(
        w1z=jnp.stack(w1z).astype(bf16), b1=jnp.stack(b1).astype(f32),
        g1=jnp.stack(g1).astype(f32), be1=jnp.stack(be1).astype(f32),
        wd=jnp.stack(wd).astype(f32), bd=jnp.stack(bd).astype(f32),
        g2=jnp.stack(g2).astype(f32), be2=jnp.stack(be2).astype(f32),
        wrs=jnp.stack(wrs).astype(bf16), brs=jnp.stack(brs).astype(f32),
        alphas=jnp.asarray(alphas, f32),                        # (NB+1, 2)
    )
    dims = dict(E=E, F=F, F2=F2, H=H, K=K, NB=NB, S=S)
    return p, dims


# ------------------------------------------------------------------ forward --

def tasnet_forward(x, params, dilations, *, enc_dim, num_spk, win, stride):
    """Mirrors TasNet.forward for a 2-D (batch, nsample) input."""
    assert win == 2 * stride, "TasNet uses stride = win // 2"
    B, nsample = x.shape
    x = x.astype(jnp.float32)

    # ---- pad_signal (tiny XLA glue) -----------------------------------------
    rest = win - (stride + nsample % win) % win
    if rest > 0:
        x = jnp.concatenate([x, jnp.zeros((B, rest), jnp.float32)], axis=1)
    x = jnp.concatenate([jnp.zeros((B, stride), jnp.float32), x,
                         jnp.zeros((B, stride), jnp.float32)], axis=1)
    total = x.shape[1]
    L = (total - win) // stride + 1
    xh = x.reshape(B, L + 1, stride)          # half-window rows (no gather)

    # ---- fused encoder + TCN + masks + decoder-frame kernel -----------------
    packed, dims = _pack_params(params, enc_dim=enc_dim, num_spk=num_spk,
                                win=win, stride=stride)
    dec = _tasnet_fused_call(xh, packed, dims, tuple(dilations),
                             L=L, win=win, stride=stride)   # (B, S, L, win)

    # ---- overlap-add (ConvTranspose1d scatter-add) ---------------------------
    # TODO(synk): overlap-add kept in XLA glue (scatter-add has no clean tiled form).
    S = num_spk
    zpad = jnp.zeros((B, S, 1, stride), jnp.float32)
    first = jnp.concatenate([dec[..., :stride], zpad], axis=2)
    second = jnp.concatenate([zpad, dec[..., stride:]], axis=2)
    sig = (first + second).reshape(B, S, (L + 1) * stride)
    sig = sig[:, :, stride:(L + 1) * stride - (rest + stride)]
    return sig


# --------------------------------------------------------------------- main --

if __name__ == "__main__":
    # small but shape-consistent hyper-parameters
    enc_dim, feature_dim = 64, 32          # hidden = 4 * feature_dim = 128
    sr, win_ms = 16000, 2
    win = int(sr * win_ms / 1000)          # 32 samples
    stride = win // 2                      # 16
    layer, stack, kernel, num_spk = 2, 1, 3, 2
    dilation_factor = 2

    key = jax.random.PRNGKey(0)
    pkey, xkey = jax.random.split(key)
    params, dilations = init_tasnet_params(
        pkey, enc_dim=enc_dim, feature_dim=feature_dim, win=win, layer=layer,
        stack=stack, kernel=kernel, num_spk=num_spk,
        dilation_factor=dilation_factor)

    B, nsample = 2, 200
    x = jax.random.normal(xkey, (B, nsample), jnp.float32)

    @jax.jit
    def run(xin):
        return tasnet_forward(xin, params, dilations, enc_dim=enc_dim,
                              num_spk=num_spk, win=win, stride=stride)

    out = jax.block_until_ready(run(x))
    assert out.shape == (B, num_spk, nsample), out.shape
    assert bool(jnp.all(jnp.isfinite(out)))
    print("KERNEL_OK")
</pallas_src>

<mosaic_0001>
module attributes {stable_mosaic.version = 11 : i64} {
  func.func @_tasnet_kernel(%arg0: i32, %arg1: memref<3x2xf32, #tpu.memory_space<smem>>, %arg2: memref<1x15x16xf32, #tpu.memory_space<vmem>>, %arg3: memref<16x64xbf16, #tpu.memory_space<vmem>>, %arg4: memref<16x64xbf16, #tpu.memory_space<vmem>>, %arg5: memref<1x64xf32, #tpu.memory_space<vmem>>, %arg6: memref<1x64xf32, #tpu.memory_space<vmem>>, %arg7: memref<64x64xbf16, #tpu.memory_space<vmem>>, %arg8: memref<1x64xf32, #tpu.memory_space<vmem>>, %arg9: memref<2x64x128xbf16, #tpu.memory_space<vmem>>, %arg10: memref<2x1x128xf32, #tpu.memory_space<vmem>>, %arg11: memref<2x1x128xf32, #tpu.memory_space<vmem>>, %arg12: memref<2x1x128xf32, #tpu.memory_space<vmem>>, %arg13: memref<2x3x128xf32, #tpu.memory_space<vmem>>, %arg14: memref<2x1x128xf32, #tpu.memory_space<vmem>>, %arg15: memref<2x1x128xf32, #tpu.memory_space<vmem>>, %arg16: memref<2x1x128xf32, #tpu.memory_space<vmem>>, %arg17: memref<2x128x64xbf16, #tpu.memory_space<vmem>>, %arg18: memref<2x1x64xf32, #tpu.memory_space<vmem>>, %arg19: memref<64x128xbf16, #tpu.memory_space<vmem>>, %arg20: memref<1x128xf32, #tpu.memory_space<vmem>>, %arg21: memref<64x32xbf16, #tpu.memory_space<vmem>>, %arg22: memref<1x2x14x32xf32, #tpu.memory_space<vmem>>, %arg23: memref<18x128xf32, #tpu.memory_space<vmem>>) attributes {dimension_semantics = [#tpu.dimension_semantics<parallel>], iteration_bounds = array<i64: 2>, scalar_prefetch = 0 : i64, scratch_operands = 1 : i64, tpu.core_type = #tpu.core_type<tc>, window_params = [{transform_indices = @transform_0, window_bounds = array<i64: 3, 2>}, {transform_indices = @transform_1, window_bounds = array<i64: 1, 15, 16>}, {pipeline_mode = #tpu.pipeline_mode<synchronous>, transform_indices = @transform_2, window_bounds = array<i64: 16, 64>}, {pipeline_mode = #tpu.pipeline_mode<synchronous>, transform_indices = @transform_3, window_bounds = array<i64: 16, 64>}, {pipeline_mode = #tpu.pipeline_mode<synchronous>, transform_indices = @transform_4, window_bounds = array<i64: 1, 64>}, {pipeline_mode = #tpu.pipeline_mode<synchronous>, transform_indices = @transform_5, window_bounds = array<i64: 1, 64>}, {pipeline_mode = #tpu.pipeline_mode<synchronous>, transform_indices = @transform_6, window_bounds = array<i64: 64, 64>}, {pipeline_mode = #tpu.pipeline_mode<synchronous>, transform_indices = @transform_7, window_bounds = array<i64: 1, 64>}, {pipeline_mode = #tpu.pipeline_mode<synchronous>, transform_indices = @transform_8, window_bounds = array<i64: 2, 64, 128>}, {pipeline_mode = #tpu.pipeline_mode<synchronous>, transform_indices = @transform_9, window_bounds = array<i64: 2, 1, 128>}, {pipeline_mode = #tpu.pipeline_mode<synchronous>, transform_indices = @transform_10, window_bounds = array<i64: 2, 1, 128>}, {pipeline_mode = #tpu.pipeline_mode<synchronous>, transform_indices = @transform_11, window_bounds = array<i64: 2, 1, 128>}, {pipeline_mode = #tpu.pipeline_mode<synchronous>, transform_indices = @transform_12, window_bounds = array<i64: 2, 3, 128>}, {pipeline_mode = #tpu.pipeline_mode<synchronous>, transform_indices = @transform_13, window_bounds = array<i64: 2, 1, 128>}, {pipeline_mode = #tpu.pipeline_mode<synchronous>, transform_indices = @transform_14, window_bounds = array<i64: 2, 1, 128>}, {pipeline_mode = #tpu.pipeline_mode<synchronous>, transform_indices = @transform_15, window_bounds = array<i64: 2, 1, 128>}, {pipeline_mode = #tpu.pipeline_mode<synchronous>, transform_indices = @transform_16, window_bounds = array<i64: 2, 128, 64>}, {pipeline_mode = #tpu.pipeline_mode<synchronous>, transform_indices = @transform_17, window_bounds = array<i64: 2, 1, 64>}, {pipeline_mode = #tpu.pipeline_mode<synchronous>, transform_indices = @transform_18, window_bounds = array<i64: 64, 128>}, {pipeline_mode = #tpu.pipeline_mode<synchronous>, transform_indices = @transform_19, window_bounds = array<i64: 1, 128>}, {pipeline_mode = #tpu.pipeline_mode<synchronous>, transform_indices = @transform_20, window_bounds = array<i64: 64, 32>}, {transform_indices = @transform_21, window_bounds = array<i64: 1, 2, 14, 32>}]} {
    %c0 = arith.constant 0 : index
    %c0_0 = arith.constant 0 : index
    %c0_1 = arith.constant 0 : index
    %0 = vector.load %arg2[%c0, %c0_0, %c0_1] : memref<1x15x16xf32, #tpu.memory_space<vmem>>, vector<1x15x16xf32>
    %1 = vector.shape_cast %0 : vector<1x15x16xf32> to vector<15x16xf32>
    %2 = vector.extract_strided_slice %1 {offsets = [0, 0], sizes = [14, 16], strides = [1, 1]} : vector<15x16xf32> to vector<14x16xf32>
    %3 = arith.truncf %2 : vector<14x16xf32> to vector<14x16xbf16>
    %c0_2 = arith.constant 0 : index
    %c0_3 = arith.constant 0 : index
    %4 = vector.load %arg3[%c0_2, %c0_3] : memref<16x64xbf16, #tpu.memory_space<vmem>>, vector<16x64xbf16>
    %cst = arith.constant dense<0.000000e+00> : vector<14x64xf32>
    %5 = tpu.matmul %3, %4, %cst {dimension_numbers = #tpu.dot_dimension_numbers<[1], [0], [0], [1], [0, 0, 1, 1], [], []>} : vector<14x16xbf16>, vector<16x64xbf16>, vector<14x64xf32> -> vector<14x64xf32>
    %6 = vector.extract_strided_slice %1 {offsets = [1, 0], sizes = [14, 16], strides = [1, 1]} : vector<15x16xf32> to vector<14x16xf32>
    %7 = arith.truncf %6 : vector<14x16xf32> to vector<14x16xbf16>
    %c0_4 = arith.constant 0 : index
    %c0_5 = arith.constant 0 : index
    %8 = vector.load %arg4[%c0_4, %c0_5] : memref<16x64xbf16, #tpu.memory_space<vmem>>, vector<16x64xbf16>
    %cst_6 = arith.constant dense<0.000000e+00> : vector<14x64xf32>
    %9 = tpu.matmul %7, %8, %cst_6 {dimension_numbers = #tpu.dot_dimension_numbers<[1], [0], [0], [1], [0, 0, 1, 1], [], []>} : vector<14x16xbf16>, vector<16x64xbf16>, vector<14x64xf32> -> vector<14x64xf32>
    %10 = arith.addf %5, %9 : vector<14x64xf32>
    %c0_7 = arith.constant 0 : index
    %c0_8 = arith.constant 0 : index
    %11 = vector.load %arg5[%c0_7, %c0_8] : memref<1x64xf32, #tpu.memory_space<vmem>>, vector<1x64xf32>
    %c0_9 = arith.constant 0 : index
    %c0_10 = arith.constant 0 : index
    %12 = vector.load %arg6[%c0_9, %c0_10] : memref<1x64xf32, #tpu.memory_space<vmem>>, vector<1x64xf32>
    %13 = vector.shape_cast %10 : vector<14x64xf32> to vector<1x14x64xf32>
    %cst_11 = arith.constant dense<0.000000e+00> : vector<1xf32>
    %14 = vector.multi_reduction <add>, %13, %cst_11 [1, 2] : vector<1x14x64xf32> to vector<1xf32>
    %15 = vector.shape_cast %14 : vector<1xf32> to vector<1x1x1xf32>
    %16 = vector.extract %15[0, 0, 0] : f32 from vector<1x1x1xf32>
    %cst_12 = arith.constant 8.960000e+02 : f32
    %17 = arith.divf %16, %cst_12 : f32
    %18 = vector.broadcast %17 : f32 to vector<14x64xf32>
    %19 = arith.subf %10, %18 : vector<14x64xf32>
    %20 = arith.mulf %19, %19 : vector<14x64xf32>
    %21 = vector.shape_cast %20 : vector<14x64xf32> to vector<1x14x64xf32>
    %cst_13 = arith.constant dense<0.000000e+00> : vector<1xf32>
    %22 = vector.multi_reduction <add>, %21, %cst_13 [1, 2] : vector<1x14x64xf32> to vector<1xf32>
    %23 = vector.shape_cast %22 : vector<1xf32> to vector<1x1x1xf32>
    %24 = vector.extract %23[0, 0, 0] : f32 from vector<1x1x1xf32>
    %cst_14 = arith.constant 8.960000e+02 : f32
    %25 = arith.divf %24, %cst_14 : f32
    %26 = vector.broadcast %17 : f32 to vector<14x64xf32>
    %27 = arith.subf %10, %26 : vector<14x64xf32>
    %cst_15 = arith.constant 9.99999993E-9 : f32
    %28 = arith.addf %25, %cst_15 : f32
    %29 = math.rsqrt %28 : f32
    %30 = vector.broadcast %29 : f32 to vector<14x64xf32>
    %31 = arith.mulf %27, %30 : vector<14x64xf32>
    %32 = vector.broadcast %11 : vector<1x64xf32> to vector<14x64xf32>
    %33 = arith.mulf %31, %32 : vector<14x64xf32>
    %34 = vector.broadcast %12 : vector<1x64xf32> to vector<14x64xf32>
    %35 = arith.addf %33, %34 : vector<14x64xf32>
    %36 = arith.truncf %35 : vector<14x64xf32> to vector<14x64xbf16>
    %c0_16 = arith.constant 0 : index
    %c0_17 = arith.constant 0 : index
    %37 = vector.load %arg7[%c0_16, %c0_17] : memref<64x64xbf16, #tpu.memory_space<vmem>>, vector<64x64xbf16>
    %cst_18 = arith.constant dense<0.000000e+00> : vector<14x64xf32>
    %38 = tpu.matmul %36, %37, %cst_18 {dimension_numbers = #tpu.dot_dimension_numbers<[1], [0], [0], [1], [0, 0, 1, 1], [], []>} : vector<14x64xbf16>, vector<64x64xbf16>, vector<14x64xf32> -> vector<14x64xf32>
    %c0_19 = arith.constant 0 : index
    %c0_20 = arith.constant 0 : index
    %39 = vector.load %arg8[%c0_19, %c0_20] : memref<1x64xf32, #tpu.memory_space<vmem>>, vector<1x64xf32>
    %40 = vector.broadcast %39 : vector<1x64xf32> to vector<14x64xf32>
    %41 = arith.addf %38, %40 : vector<14x64xf32>
    %c0_21 = arith.constant 0 : index
    %c0_22 = arith.constant 0 : index
    %42 = memref.load %arg1[%c0_21, %c0_22] : memref<3x2xf32, #tpu.memory_space<smem>>
    %c0_23 = arith.constant 0 : index
    %c1 = arith.constant 1 : index
    %43 = memref.load %arg1[%c0_23, %c1] : memref<3x2xf32, #tpu.memory_space<smem>>
    %44 = arith.truncf %41 : vector<14x64xf32> to vector<14x64xbf16>
    %c0_24 = arith.constant 0 : index
    %c0_25 = arith.constant 0 : index
    %c0_26 = arith.constant 0 : index
    %45 = vector.load %arg9[%c0_24, %c0_25, %c0_26] : memref<2x64x128xbf16, #tpu.memory_space<vmem>>, vector<1x64x128xbf16>
    %46 = vector.shape_cast %45 : vector<1x64x128xbf16> to vector<64x128xbf16>
    %cst_27 = arith.constant dense<0.000000e+00> : vector<14x128xf32>
    %47 = tpu.matmul %44, %46, %cst_27 {dimension_numbers = #tpu.dot_dimension_numbers<[1], [0], [0], [1], [0, 0, 1, 1], [], []>} : vector<14x64xbf16>, vector<64x128xbf16>, vector<14x128xf32> -> vector<14x128xf32>
    %c0_28 = arith.constant 0 : index
    %c0_29 = arith.constant 0 : index
    %c0_30 = arith.constant 0 : index
    %48 = vector.load %arg10[%c0_28, %c0_29, %c0_30] : memref<2x1x128xf32, #tpu.memory_space<vmem>>, vector<1x1x128xf32>
    %49 = vector.shape_cast %48 : vector<1x1x128xf32> to vector<1x128xf32>
    %50 = vector.broadcast %49 : vector<1x128xf32> to vector<14x128xf32>
    %51 = arith.addf %47, %50 : vector<14x128xf32>
    %cst_31 = arith.constant 0.000000e+00 : f32
    %52 = vector.broadcast %cst_31 : f32 to vector<14x128xf32>
    %53 = arith.cmpf oge, %51, %52 : vector<14x128xf32>
    %54 = vector.broadcast %42 : f32 to vector<14x128xf32>
    %55 = arith.mulf %54, %51 : vector<14x128xf32>
    %56 = arith.select %53, %51, %55 : vector<14x128xi1>, vector<14x128xf32>
    %c0_32 = arith.constant 0 : index
    %c0_33 = arith.constant 0 : index
    %c0_34 = arith.constant 0 : index
    %57 = vector.load %arg11[%c0_32, %c0_33, %c0_34] : memref<2x1x128xf32, #tpu.memory_space<vmem>>, vector<1x1x128xf32>
    %58 = vector.shape_cast %57 : vector<1x1x128xf32> to vector<1x128xf32>
    %c0_35 = arith.constant 0 : index
    %c0_36 = arith.constant 0 : index
    %c0_37 = arith.constant 0 : index
    %59 = vector.load %arg12[%c0_35, %c0_36, %c0_37] : memref<2x1x128xf32, #tpu.memory_space<vmem>>, vector<1x1x128xf32>
    %60 = vector.shape_cast %59 : vector<1x1x128xf32> to vector<1x128xf32>
    %61 = vector.shape_cast %56 : vector<14x128xf32> to vector<1x14x128xf32>
    %cst_38 = arith.constant dense<0.000000e+00> : vector<1xf32>
    %62 = vector.multi_reduction <add>, %61, %cst_38 [1, 2] : vector<1x14x128xf32> to vector<1xf32>
    %63 = vector.shape_cast %62 : vector<1xf32> to vector<1x1x1xf32>
    %64 = vector.extract %63[0, 0, 0] : f32 from vector<1x1x1xf32>
    %cst_39 = arith.constant 1.792000e+03 : f32
    %65 = arith.divf %64, %cst_39 : f32
    %66 = vector.broadcast %65 : f32 to vector<14x128xf32>
    %67 = arith.subf %56, %66 : vector<14x128xf32>
    %68 = arith.mulf %67, %67 : vector<14x128xf32>
    %69 = vector.shape_cast %68 : vector<14x128xf32> to vector<1x14x128xf32>
    %cst_40 = arith.constant dense<0.000000e+00> : vector<1xf32>
    %70 = vector.multi_reduction <add>, %69, %cst_40 [1, 2] : vector<1x14x128xf32> to vector<1xf32>
    %71 = vector.shape_cast %70 : vector<1xf32> to vector<1x1x1xf32>
    %72 = vector.extract %71[0, 0, 0] : f32 from vector<1x1x1xf32>
    %cst_41 = arith.constant 1.792000e+03 : f32
    %73 = arith.divf %72, %cst_41 : f32
    %74 = vector.broadcast %65 : f32 to vector<14x128xf32>
    %75 = arith.subf %56, %74 : vector<14x128xf32>
    %cst_42 = arith.constant 9.99999993E-9 : f32
    %76 = arith.addf %73, %cst_42 : f32
    %77 = math.rsqrt %76 : f32
    %78 = vector.broadcast %77 : f32 to vector<14x128xf32>
    %79 = arith.mulf %75, %78 : vector<14x128xf32>
    %80 = vector.broadcast %58 : vector<1x128xf32> to vector<14x128xf32>
    %81 = arith.mulf %79, %80 : vector<14x128xf32>
    %82 = vector.broadcast %60 : vector<1x128xf32> to vector<14x128xf32>
    %83 = arith.addf %81, %82 : vector<14x128xf32>
    %cst_43 = arith.constant 0.000000e+00 : f32
    %84 = vector.broadcast %cst_43 : f32 to vector<18x128xf32>
    %c0_44 = arith.constant 0 : index
    %c0_45 = arith.constant 0 : index
    %85 = vector.load %arg23[%c0_44, %c0_45] : memref<18x128xf32, #tpu.memory_space<vmem>>, vector<18x128xf32>
    tpu.vector_store %arg23[%c0_44, %c0_45], %84 {strides = array<i32>} : memref<18x128xf32, #tpu.memory_space<vmem>>, vector<18x128xf32>,
    %c1_46 = arith.constant 1 : index
    %c0_47 = arith.constant 0 : index
    %86 = vector.load %arg23[%c1_46, %c0_47] : memref<18x128xf32, #tpu.memory_space<vmem>>, vector<14x128xf32>
    tpu.vector_store %arg23[%c1_46, %c0_47], %83 {strides = array<i32>} : memref<18x128xf32, #tpu.memory_space<vmem>>, vector<14x128xf32>,
    %c0_48 = arith.constant 0 : index
    %c0_49 = arith.constant 0 : index
    %c0_50 = arith.constant 0 : index
    %87 = vector.load %arg13[%c0_48, %c0_49, %c0_50] : memref<2x3x128xf32, #tpu.memory_space<vmem>>, vector<1x3x128xf32>
    %88 = vector.shape_cast %87 : vector<1x3x128xf32> to vector<3x128xf32>
    %cst_51 = arith.constant 0.000000e+00 : f32
    %89 = vector.broadcast %cst_51 : f32 to vector<14x128xf32>
    %c0_52 = arith.constant 0 : index
    %c0_53 = arith.constant 0 : index
    %c0_54 = arith.constant 0 : index
    %90 = vector.load %arg14[%c0_52, %c0_53, %c0_54] : memref<2x1x128xf32, #tpu.memory_space<vmem>>, vector<1x1x128xf32>
    %91 = vector.shape_cast %90 : vector<1x1x128xf32> to vector<1x128xf32>
    %92 = vector.broadcast %91 : vector<1x128xf32> to vector<14x128xf32>
    %93 = arith.addf %89, %92 : vector<14x128xf32>
    %c0_55 = arith.constant 0 : index
    %c0_56 = arith.constant 0 : index
    %94 = vector.load %arg23[%c0_55, %c0_56] : memref<18x128xf32, #tpu.memory_space<vmem>>, vector<14x128xf32>
    %95 = vector.extract_strided_slice %88 {offsets = [0, 0], sizes = [1, 128], strides = [1, 1]} : vector<3x128xf32> to vector<1x128xf32>
    %96 = vector.broadcast %95 : vector<1x128xf32> to vector<14x128xf32>
    %97 = arith.mulf %94, %96 : vector<14x128xf32>
    %98 = arith.addf %93, %97 : vector<14x128xf32>
    %c1_57 = arith.constant 1 : index
    %c0_58 = arith.constant 0 : index
    %99 = vector.load %arg23[%c1_57, %c0_58] : memref<18x128xf32, #tpu.memory_space<vmem>>, vector<14x128xf32>
    %100 = vector.extract_strided_slice %88 {offsets = [1, 0], sizes = [1, 128], strides = [1, 1]} : vector<3x128xf32> to vector<1x128xf32>
    %101 = vector.broadcast %100 : vector<1x128xf32> to vector<14x128xf32>
    %102 = arith.mulf %99, %101 : vector<14x128xf32>
    %103 = arith.addf %98, %102 : vector<14x128xf32>
    %c2 = arith.constant 2 : index
    %c0_59 = arith.constant 0 : index
    %104 = vector.load %arg23[%c2, %c0_59] : memref<18x128xf32, #tpu.memory_space<vmem>>, vector<14x128xf32>
    %105 = vector.extract_strided_slice %88 {offsets = [2, 0], sizes = [1, 128], strides = [1, 1]} : vector<3x128xf32> to vector<1x128xf32>
    %106 = vector.broadcast %105 : vector<1x128xf32> to vector<14x128xf32>
    %107 = arith.mulf %104, %106 : vector<14x128xf32>
    %108 = arith.addf %103, %107 : vector<14x128xf32>
    %cst_60 = arith.constant 0.000000e+00 : f32
    %109 = vector.broadcast %cst_60 : f32 to vector<14x128xf32>
    %110 = arith.cmpf oge, %108, %109 : vector<14x128xf32>
    %111 = vector.broadcast %43 : f32 to vector<14x128xf32>
    %112 = arith.mulf %111, %108 : vector<14x128xf32>
    %113 = arith.select %110, %108, %112 : vector<14x128xi1>, vector<14x128xf32>
    %c0_61 = arith.constant 0 : index
    %c0_62 = arith.constant 0 : index
    %c0_63 = arith.constant 0 : index
    %114 = vector.load %arg15[%c0_61, %c0_62, %c0_63] : memref<2x1x128xf32, #tpu.memory_space<vmem>>, vector<1x1x128xf32>
    %115 = vector.shape_cast %114 : vector<1x1x128xf32> to vector<1x128xf32>
    %c0_64 = arith.constant 0 : index
    %c0_65 = arith.constant 0 : index
    %c0_66 = arith.constant 0 : index
    %116 = vector.load %arg16[%c0_64, %c0_65, %c0_66] : memref<2x1x128xf32, #tpu.memory_space<vmem>>, vector<1x1x128xf32>
    %117 = vector.shape_cast %116 : vector<1x1x128xf32> to vector<1x128xf32>
    %118 = vector.shape_cast %113 : vector<14x128xf32> to vector<1x14x128xf32>
    %cst_67 = arith.constant dense<0.000000e+00> : vector<1xf32>
    %119 = vector.multi_reduction <add>, %118, %cst_67 [1, 2] : vector<1x14x128xf32> to vector<1xf32>
    %120 = vector.shape_cast %119 : vector<1xf32> to vector<1x1x1xf32>
    %121 = vector.extract %120[0, 0, 0] : f32 from vector<1x1x1xf32>
    %cst_68 = arith.constant 1.792000e+03 : f32
    %122 = arith.divf %121, %cst_68 : f32
    %123 = vector.broadcast %122 : f32 to vector<14x128xf32>
    %124 = arith.subf %113, %123 : vector<14x128xf32>
    %125 = arith.mulf %124, %124 : vector<14x128xf32>
    %126 = vector.shape_cast %125 : vector<14x128xf32> to vector<1x14x128xf32>
    %cst_69 = arith.constant dense<0.000000e+00> : vector<1xf32>
    %127 = vector.multi_reduction <add>, %126, %cst_69 [1, 2] : vector<1x14x128xf32> to vector<1xf32>
    %128 = vector.shape_cast %127 : vector<1xf32> to vector<1x1x1xf32>
    %129 = vector.extract %128[0, 0, 0] : f32 from vector<1x1x1xf32>
    %cst_70 = arith.constant 1.792000e+03 : f32
    %130 = arith.divf %129, %cst_70 : f32
    %131 = vector.broadcast %122 : f32 to vector<14x128xf32>
    %132 = arith.subf %113, %131 : vector<14x128xf32>
    %cst_71 = arith.constant 9.99999993E-9 : f32
    %133 = arith.addf %130, %cst_71 : f32
    %134 = math.rsqrt %133 : f32
    %135 = vector.broadcast %134 : f32 to vector<14x128xf32>
    %136 = arith.mulf %132, %135 : vector<14x128xf32>
    %137 = vector.broadcast %115 : vector<1x128xf32> to vector<14x128xf32>
    %138 = arith.mulf %136, %137 : vector<14x128xf32>
    %139 = vector.broadcast %117 : vector<1x128xf32> to vector<14x128xf32>
    %140 = arith.addf %138, %139 : vector<14x128xf32>
    %141 = arith.truncf %140 : vector<14x128xf32> to vector<14x128xbf16>
    %c0_72 = arith.constant 0 : index
    %c0_73 = arith.constant 0 : index
    %c0_74 = arith.constant 0 : index
    %142 = vector.load %arg17[%c0_72, %c0_73, %c0_74] : memref<2x128x64xbf16, #tpu.memory_space<vmem>>, vector<1x128x64xbf16>
    %143 = vector.shape_cast %142 : vector<1x128x64xbf16> to vector<128x64xbf16>
    %cst_75 = arith.constant dense<0.000000e+00> : vector<14x64xf32>
    %144 = tpu.matmul %141, %143, %cst_75 {dimension_numbers = #tpu.dot_dimension_numbers<[1], [0], [0], [1], [0, 0, 1, 1], [], []>} : vector<14x128xbf16>, vector<128x64xbf16>, vector<14x64xf32> -> vector<14x64xf32>
    %145 = arith.addf %41, %144 : vector<14x64xf32>
    %c0_76 = arith.constant 0 : index
    %c0_77 = arith.constant 0 : index
    %c0_78 = arith.constant 0 : index
    %146 = vector.load %arg18[%c0_76, %c0_77, %c0_78] : memref<2x1x64xf32, #tpu.memory_space<vmem>>, vector<1x1x64xf32>
    %147 = vector.shape_cast %146 : vector<1x1x64xf32> to vector<1x64xf32>
    %148 = vector.broadcast %147 : vector<1x64xf32> to vector<14x64xf32>
    %149 = arith.addf %145, %148 : vector<14x64xf32>
    %c1_79 = arith.constant 1 : index
    %c0_80 = arith.constant 0 : index
    %150 = memref.load %arg1[%c1_79, %c0_80] : memref<3x2xf32, #tpu.memory_space<smem>>
    %c1_81 = arith.constant 1 : index
    %c1_82 = arith.constant 1 : index
    %151 = memref.load %arg1[%c1_81, %c1_82] : memref<3x2xf32, #tpu.memory_space<smem>>
    %152 = arith.truncf %149 : vector<14x64xf32> to vector<14x64xbf16>
    %c1_83 = arith.constant 1 : index
    %c0_84 = arith.constant 0 : index
    %c0_85 = arith.constant 0 : index
    %153 = vector.load %arg9[%c1_83, %c0_84, %c0_85] : memref<2x64x128xbf16, #tpu.memory_space<vmem>>, vector<1x64x128xbf16>
    %154 = vector.shape_cast %153 : vector<1x64x128xbf16> to vector<64x128xbf16>
    %cst_86 = arith.constant dense<0.000000e+00> : vector<14x128xf32>
    %155 = tpu.matmul %152, %154, %cst_86 {dimension_numbers = #tpu.dot_dimension_numbers<[1], [0], [0], [1], [0, 0, 1, 1], [], []>} : vector<14x64xbf16>, vector<64x128xbf16>, vector<14x128xf32> -> vector<14x128xf32>
    %c1_87 = arith.constant 1 : index
    %c0_88 = arith.constant 0 : index
    %c0_89 = arith.constant 0 : index
    %156 = vector.load %arg10[%c1_87, %c0_88, %c0_89] : memref<2x1x128xf32, #tpu.memory_space<vmem>>, vector<1x1x128xf32>
    %157 = vector.shape_cast %156 : vector<1x1x128xf32> to vector<1x128xf32>
    %158 = vector.broadcast %157 : vector<1x128xf32> to vector<14x128xf32>
    %159 = arith.addf %155, %158 : vector<14x128xf32>
    %cst_90 = arith.constant 0.000000e+00 : f32
    %160 = vector.broadcast %cst_90 : f32 to vector<14x128xf32>
    %161 = arith.cmpf oge, %159, %160 : vector<14x128xf32>
    %162 = vector.broadcast %150 : f32 to vector<14x128xf32>
    %163 = arith.mulf %162, %159 : vector<14x128xf32>
    %164 = arith.select %161, %159, %163 : vector<14x128xi1>, vector<14x128xf32>
    %c1_91 = arith.constant 1 : index
    %c0_92 = arith.constant 0 : index
    %c0_93 = arith.constant 0 : index
    %165 = vector.load %arg11[%c1_91, %c0_92, %c0_93] : memref<2x1x128xf32, #tpu.memory_space<vmem>>, vector<1x1x128xf32>
    %166 = vector.shape_cast %165 : vector<1x1x128xf32> to vector<1x128xf32>
    %c1_94 = arith.constant 1 : index
    %c0_95 = arith.constant 0 : index
    %c0_96 = arith.constant 0 : index
    %167 = vector.load %arg12[%c1_94, %c0_95, %c0_96] : memref<2x1x128xf32, #tpu.memory_space<vmem>>, vector<1x1x128xf32>
    %168 = vector.shape_cast %167 : vector<1x1x128xf32> to vector<1x128xf32>
    %169 = vector.shape_cast %164 : vector<14x128xf32> to vector<1x14x128xf32>
    %cst_97 = arith.constant dense<0.000000e+00> : vector<1xf32>
    %170 = vector.multi_reduction <add>, %169, %cst_97 [1, 2] : vector<1x14x128xf32> to vector<1xf32>
    %171 = vector.shape_cast %170 : vector<1xf32> to vector<1x1x1xf32>
    %172 = vector.extract %171[0, 0, 0] : f32 from vector<1x1x1xf32>
    %cst_98 = arith.constant 1.792000e+03 : f32
    %173 = arith.divf %172, %cst_98 : f32
    %174 = vector.broadcast %173 : f32 to vector<14x128xf32>
    %175 = arith.subf %164, %174 : vector<14x128xf32>
    %176 = arith.mulf %175, %175 : vector<14x128xf32>
    %177 = vector.shape_cast %176 : vector<14x128xf32> to vector<1x14x128xf32>
    %cst_99 = arith.constant dense<0.000000e+00> : vector<1xf32>
    %178 = vector.multi_reduction <add>, %177, %cst_99 [1, 2] : vector<1x14x128xf32> to vector<1xf32>
    %179 = vector.shape_cast %178 : vector<1xf32> to vector<1x1x1xf32>
    %180 = vector.extract %179[0, 0, 0] : f32 from vector<1x1x1xf32>
    %cst_100 = arith.constant 1.792000e+03 : f32
    %181 = arith.divf %180, %cst_100 : f32
    %182 = vector.broadcast %173 : f32 to vector<14x128xf32>
    %183 = arith.subf %164, %182 : vector<14x128xf32>
    %cst_101 = arith.constant 9.99999993E-9 : f32
    %184 = arith.addf %181, %cst_101 : f32
    %185 = math.rsqrt %184 : f32
    %186 = vector.broadcast %185 : f32 to vector<14x128xf32>
    %187 = arith.mulf %183, %186 : vector<14x128xf32>
    %188 = vector.broadcast %166 : vector<1x128xf32> to vector<14x128xf32>
    %189 = arith.mulf %187, %188 : vector<14x128xf32>
    %190 = vector.broadcast %168 : vector<1x128xf32> to vector<14x128xf32>
    %191 = arith.addf %189, %190 : vector<14x128xf32>
    %cst_102 = arith.constant 0.000000e+00 : f32
    %192 = vector.broadcast %cst_102 : f32 to vector<18x128xf32>
    %c0_103 = arith.constant 0 : index
    %c0_104 = arith.constant 0 : index
    %193 = vector.load %arg23[%c0_103, %c0_104] : memref<18x128xf32, #tpu.memory_space<vmem>>, vector<18x128xf32>
    tpu.vector_store %arg23[%c0_103, %c0_104], %192 {strides = array<i32>} : memref<18x128xf32, #tpu.memory_space<vmem>>, vector<18x128xf32>,
    %c2_105 = arith.constant 2 : index
    %c0_106 = arith.constant 0 : index
    %194 = vector.load %arg23[%c2_105, %c0_106] : memref<18x128xf32, #tpu.memory_space<vmem>>, vector<14x128xf32>
    tpu.vector_store %arg23[%c2_105, %c0_106], %191 {strides = array<i32>} : memref<18x128xf32, #tpu.memory_space<vmem>>, vector<14x128xf32>,
    %c1_107 = arith.constant 1 : index
    %c0_108 = arith.constant 0 : index
    %c0_109 = arith.constant 0 : index
    %195 = vector.load %arg13[%c1_107, %c0_108, %c0_109] : memref<2x3x128xf32, #tpu.memory_space<vmem>>, vector<1x3x128xf32>
    %196 = vector.shape_cast %195 : vector<1x3x128xf32> to vector<3x128xf32>
    %cst_110 = arith.constant 0.000000e+00 : f32
    %197 = vector.broadcast %cst_110 : f32 to vector<14x128xf32>
    %c1_111 = arith.constant 1 : index
    %c0_112 = arith.constant 0 : index
    %c0_113 = arith.constant 0 : index
    %198 = vector.load %arg14[%c1_111, %c0_112, %c0_113] : memref<2x1x128xf32, #tpu.memory_space<vmem>>, vector<1x1x128xf32>
    %199 = vector.shape_cast %198 : vector<1x1x128xf32> to vector<1x128xf32>
    %200 = vector.broadcast %199 : vector<1x128xf32> to vector<14x128xf32>
    %201 = arith.addf %197, %200 : vector<14x128xf32>
    %c0_114 = arith.constant 0 : index
    %c0_115 = arith.constant 0 : index
    %202 = vector.load %arg23[%c0_114, %c0_115] : memref<18x128xf32, #tpu.memory_space<vmem>>, vector<14x128xf32>
    %203 = vector.extract_strided_slice %196 {offsets = [0, 0], sizes = [1, 128], strides = [1, 1]} : vector<3x128xf32> to vector<1x128xf32>
    %204 = vector.broadcast %203 : vector<1x128xf32> to vector<14x128xf32>
    %205 = arith.mulf %202, %204 : vector<14x128xf32>
    %206 = arith.addf %201, %205 : vector<14x128xf32>
    %c2_116 = arith.constant 2 : index
    %c0_117 = arith.constant 0 : index
    %207 = vector.load %arg23[%c2_116, %c0_117] : memref<18x128xf32, #tpu.memory_space<vmem>>, vector<14x128xf32>
    %208 = vector.extract_strided_slice %196 {offsets = [1, 0], sizes = [1, 128], strides = [1, 1]} : vector<3x128xf32> to vector<1x128xf32>
    %209 = vector.broadcast %208 : vector<1x128xf32> to vector<14x128xf32>
    %210 = arith.mulf %207, %209 : vector<14x128xf32>
    %211 = arith.addf %206, %210 : vector<14x128xf32>
    %c4 = arith.constant 4 : index
    %c0_118 = arith.constant 0 : index
    %212 = vector.load %arg23[%c4, %c0_118] : memref<18x128xf32, #tpu.memory_space<vmem>>, vector<14x128xf32>
    %213 = vector.extract_strided_slice %196 {offsets = [2, 0], sizes = [1, 128], strides = [1, 1]} : vector<3x128xf32> to vector<1x128xf32>
    %214 = vector.broadcast %213 : vector<1x128xf32> to vector<14x128xf32>
    %215 = arith.mulf %212, %214 : vector<14x128xf32>
    %216 = arith.addf %211, %215 : vector<14x128xf32>
    %cst_119 = arith.constant 0.000000e+00 : f32
    %217 = vector.broadcast %cst_119 : f32 to vector<14x128xf32>
    %218 = arith.cmpf oge, %216, %217 : vector<14x128xf32>
    %219 = vector.broadcast %151 : f32 to vector<14x128xf32>
    %220 = arith.mulf %219, %216 : vector<14x128xf32>
    %221 = arith.select %218, %216, %220 : vector<14x128xi1>, vector<14x128xf32>
    %c1_120 = arith.constant 1 : index
    %c0_121 = arith.constant 0 : index
    %c0_122 = arith.constant 0 : index
    %222 = vector.load %arg15[%c1_120, %c0_121, %c0_122] : memref<2x1x128xf32, #tpu.memory_space<vmem>>, vector<1x1x128xf32>
    %223 = vector.shape_cast %222 : vector<1x1x128xf32> to vector<1x128xf32>
    %c1_123 = arith.constant 1 : index
    %c0_124 = arith.constant 0 : index
    %c0_125 = arith.constant 0 : index
    %224 = vector.load %arg16[%c1_123, %c0_124, %c0_125] : memref<2x1x128xf32, #tpu.memory_space<vmem>>, vector<1x1x128xf32>
    %225 = vector.shape_cast %224 : vector<1x1x128xf32> to vector<1x128xf32>
    %226 = vector.shape_cast %221 : vector<14x128xf32> to vector<1x14x128xf32>
    %cst_126 = arith.constant dense<0.000000e+00> : vector<1xf32>
    %227 = vector.multi_reduction <add>, %226, %cst_126 [1, 2] : vector<1x14x128xf32> to vector<1xf32>
    %228 = vector.shape_cast %227 : vector<1xf32> to vector<1x1x1xf32>
    %229 = vector.extract %228[0, 0, 0] : f32 from vector<1x1x1xf32>
    %cst_127 = arith.constant 1.792000e+03 : f32
    %230 = arith.divf %229, %cst_127 : f32
    %231 = vector.broadcast %230 : f32 to vector<14x128xf32>
    %232 = arith.subf %221, %231 : vector<14x128xf32>
    %233 = arith.mulf %232, %232 : vector<14x128xf32>
    %234 = vector.shape_cast %233 : vector<14x128xf32> to vector<1x14x128xf32>
    %cst_128 = arith.constant dense<0.000000e+00> : vector<1xf32>
    %235 = vector.multi_reduction <add>, %234, %cst_128 [1, 2] : vector<1x14x128xf32> to vector<1xf32>
    %236 = vector.shape_cast %235 : vector<1xf32> to vector<1x1x1xf32>
    %237 = vector.extract %236[0, 0, 0] : f32 from vector<1x1x1xf32>
    %cst_129 = arith.constant 1.792000e+03 : f32
    %238 = arith.divf %237, %cst_129 : f32
    %239 = vector.broadcast %230 : f32 to vector<14x128xf32>
    %240 = arith.subf %221, %239 : vector<14x128xf32>
    %cst_130 = arith.constant 9.99999993E-9 : f32
    %241 = arith.addf %238, %cst_130 : f32
    %242 = math.rsqrt %241 : f32
    %243 = vector.broadcast %242 : f32 to vector<14x128xf32>
    %244 = arith.mulf %240, %243 : vector<14x128xf32>
    %245 = vector.broadcast %223 : vector<1x128xf32> to vector<14x128xf32>
    %246 = arith.mulf %244, %245 : vector<14x128xf32>
    %247 = vector.broadcast %225 : vector<1x128xf32> to vector<14x128xf32>
    %248 = arith.addf %246, %247 : vector<14x128xf32>
    %249 = arith.truncf %248 : vector<14x128xf32> to vector<14x128xbf16>
    %c1_131 = arith.constant 1 : index
    %c0_132 = arith.constant 0 : index
    %c0_133 = arith.constant 0 : index
    %250 = vector.load %arg17[%c1_131, %c0_132, %c0_133] : memref<2x128x64xbf16, #tpu.memory_space<vmem>>, vector<1x128x64xbf16>
    %251 = vector.shape_cast %250 : vector<1x128x64xbf16> to vector<128x64xbf16>
    %cst_134 = arith.constant dense<0.000000e+00> : vector<14x64xf32>
    %252 = tpu.matmul %249, %251, %cst_134 {dimension_numbers = #tpu.dot_dimension_numbers<[1], [0], [0], [1], [0, 0, 1, 1], [], []>} : vector<14x128xbf16>, vector<128x64xbf16>, vector<14x64xf32> -> vector<14x64xf32>
    %253 = arith.addf %149, %252 : vector<14x64xf32>
    %c1_135 = arith.constant 1 : index
    %c0_136 = arith.constant 0 : index
    %c0_137 = arith.constant 0 : index
    %254 = vector.load %arg18[%c1_135, %c0_136, %c0_137] : memref<2x1x64xf32, #tpu.memory_space<vmem>>, vector<1x1x64xf32>
    %255 = vector.shape_cast %254 : vector<1x1x64xf32> to vector<1x64xf32>
    %256 = vector.broadcast %255 : vector<1x64xf32> to vector<14x64xf32>
    %257 = arith.addf %253, %256 : vector<14x64xf32>
    %c2_138 = arith.constant 2 : index
    %c0_139 = arith.constant 0 : index
    %258 = memref.load %arg1[%c2_138, %c0_139] : memref<3x2xf32, #tpu.memory_space<smem>>
    %cst_140 = arith.constant 0.000000e+00 : f32
    %259 = vector.broadcast %cst_140 : f32 to vector<14x64xf32>
    %260 = arith.cmpf oge, %257, %259 : vector<14x64xf32>
    %261 = vector.broadcast %258 : f32 to vector<14x64xf32>
    %262 = arith.mulf %261, %257 : vector<14x64xf32>
    %263 = arith.select %260, %257, %262 : vector<14x64xi1>, vector<14x64xf32>
    %264 = arith.truncf %263 : vector<14x64xf32> to vector<14x64xbf16>
    %c0_141 = arith.constant 0 : index
    %c0_142 = arith.constant 0 : index
    %265 = vector.load %arg19[%c0_141, %c0_142] : memref<64x128xbf16, #tpu.memory_space<vmem>>, vector<64x128xbf16>
    %cst_143 = arith.constant dense<0.000000e+00> : vector<14x128xf32>
    %266 = tpu.matmul %264, %265, %cst_143 {dimension_numbers = #tpu.dot_dimension_numbers<[1], [0], [0], [1], [0, 0, 1, 1], [], []>} : vector<14x64xbf16>, vector<64x128xbf16>, vector<14x128xf32> -> vector<14x128xf32>
    %c0_144 = arith.constant 0 : index
    %c0_145 = arith.constant 0 : index
    %267 = vector.load %arg20[%c0_144, %c0_145] : memref<1x128xf32, #tpu.memory_space<vmem>>, vector<1x128xf32>
    %268 = vector.broadcast %267 : vector<1x128xf32> to vector<14x128xf32>
    %269 = arith.addf %266, %268 : vector<14x128xf32>
    %270 = vector.extract_strided_slice %269 {offsets = [0, 0], sizes = [14, 64], strides = [1, 1]} : vector<14x128xf32> to vector<14x64xf32>
    %271 = arith.negf %270 : vector<14x64xf32>
    %272 = math.exp %271 : vector<14x64xf32>
    %cst_146 = arith.constant 1.000000e+00 : f32
    %273 = vector.broadcast %cst_146 : f32 to vector<14x64xf32>
    %274 = arith.addf %273, %272 : vector<14x64xf32>
    %275 = arith.divf %273, %274 : vector<14x64xf32>
    %276 = arith.mulf %10, %275 : vector<14x64xf32>
    %277 = arith.truncf %276 : vector<14x64xf32> to vector<14x64xbf16>
    %c0_147 = arith.constant 0 : index
    %c0_148 = arith.constant 0 : index
    %278 = vector.load %arg21[%c0_147, %c0_148] : memref<64x32xbf16, #tpu.memory_space<vmem>>, vector<64x32xbf16>
    %cst_149 = arith.constant dense<0.000000e+00> : vector<14x32xf32>
    %279 = tpu.matmul %277, %278, %cst_149 {dimension_numbers = #tpu.dot_dimension_numbers<[1], [0], [0], [1], [0, 0, 1, 1], [], []>} : vector<14x64xbf16>, vector<64x32xbf16>, vector<14x32xf32> -> vector<14x32xf32>
    %c0_150 = arith.constant 0 : index
    %c0_151 = arith.constant 0 : index
    %c0_152 = arith.constant 0 : index
    %c0_153 = arith.constant 0 : index
    %280 = vector.load %arg22[%c0_150, %c0_151, %c0_152, %c0_153] : memref<1x2x14x32xf32, #tpu.memory_space<vmem>>, vector<1x1x14x32xf32>
    %281 = vector.shape_cast %280 : vector<1x1x14x32xf32> to vector<14x32xf32>
    %282 = vector.shape_cast %279 : vector<14x32xf32> to vector<1x1x14x32xf32>
    tpu.vector_store %arg22[%c0_150, %c0_151, %c0_152, %c0_153], %282 {strides = array<i32>} : memref<1x2x14x32xf32, #tpu.memory_space<vmem>>, vector<1x1x14x32xf32>,
    %283 = vector.extract_strided_slice %269 {offsets = [0, 64], sizes = [14, 64], strides = [1, 1]} : vector<14x128xf32> to vector<14x64xf32>
    %284 = arith.negf %283 : vector<14x64xf32>
    %285 = math.exp %284 : vector<14x64xf32>
    %cst_154 = arith.constant 1.000000e+00 : f32
    %286 = vector.broadcast %cst_154 : f32 to vector<14x64xf32>
    %287 = arith.addf %286, %285 : vector<14x64xf32>
    %288 = arith.divf %286, %287 : vector<14x64xf32>
    %289 = arith.mulf %10, %288 : vector<14x64xf32>
    %290 = arith.truncf %289 : vector<14x64xf32> to vector<14x64xbf16>
    %c0_155 = arith.constant 0 : index
    %c0_156 = arith.constant 0 : index
    %291 = vector.load %arg21[%c0_155, %c0_156] : memref<64x32xbf16, #tpu.memory_space<vmem>>, vector<64x32xbf16>
    %cst_157 = arith.constant dense<0.000000e+00> : vector<14x32xf32>
    %292 = tpu.matmul %290, %291, %cst_157 {dimension_numbers = #tpu.dot_dimension_numbers<[1], [0], [0], [1], [0, 0, 1, 1], [], []>} : vector<14x64xbf16>, vector<64x32xbf16>, vector<14x32xf32> -> vector<14x32xf32>
    %c0_158 = arith.constant 0 : index
    %c1_159 = arith.constant 1 : index
    %c0_160 = arith.constant 0 : index
    %c0_161 = arith.constant 0 : index
    %293 = vector.load %arg22[%c0_158, %c1_159, %c0_160, %c0_161] : memref<1x2x14x32xf32, #tpu.memory_space<vmem>>, vector<1x1x14x32xf32>
    %294 = vector.shape_cast %293 : vector<1x1x14x32xf32> to vector<14x32xf32>
    %295 = vector.shape_cast %292 : vector<14x32xf32> to vector<1x1x14x32xf32>
    tpu.vector_store %arg22[%c0_158, %c1_159, %c0_160, %c0_161], %295 {strides = array<i32>} : memref<1x2x14x32xf32, #tpu.memory_space<vmem>>, vector<1x1x14x32xf32>,
    return
  }
  func.func @transform_0(%arg0: i32) -> (i32, i32) {
    %c0_i32 = arith.constant 0 : i32
    %c0_i32_0 = arith.constant 0 : i32
    %c0_i32_1 = arith.constant 0 : i32
    return %c0_i32, %c0_i32_0 : i32, i32
  }
  func.func @transform_1(%arg0: i32) -> (i32, i32, i32) {
    %c0_i32 = arith.constant 0 : i32
    %c0_i32_0 = arith.constant 0 : i32
    %c0_i32_1 = arith.constant 0 : i32
    return %arg0, %c0_i32, %c0_i32_0 : i32, i32, i32
  }
  func.func @transform_2(%arg0: i32) -> (i32, i32) {
    %c0_i32 = arith.constant 0 : i32
    %c0_i32_0 = arith.constant 0 : i32
    %c0_i32_1 = arith.constant 0 : i32
    return %c0_i32, %c0_i32_0 : i32, i32
  }
  func.func @transform_3(%arg0: i32) -> (i32, i32) {
    %c0_i32 = arith.constant 0 : i32
    %c0_i32_0 = arith.constant 0 : i32
    %c0_i32_1 = arith.constant 0 : i32
    return %c0_i32, %c0_i32_0 : i32, i32
  }
  func.func @transform_4(%arg0: i32) -> (i32, i32) {
    %c0_i32 = arith.constant 0 : i32
    %c0_i32_0 = arith.constant 0 : i32
    %c0_i32_1 = arith.constant 0 : i32
    return %c0_i32, %c0_i32_0 : i32, i32
  }
  func.func @transform_5(%arg0: i32) -> (i32, i32) {
    %c0_i32 = arith.constant 0 : i32
    %c0_i32_0 = arith.constant 0 : i32
    %c0_i32_1 = arith.constant 0 : i32
    return %c0_i32, %c0_i32_0 : i32, i32
  }
  func.func @transform_6(%arg0: i32) -> (i32, i32) {
    %c0_i32 = arith.constant 0 : i32
    %c0_i32_0 = arith.constant 0 : i32
    %c0_i32_1 = arith.constant 0 : i32
    return %c0_i32, %c0_i32_0 : i32, i32
  }
  func.func @transform_7(%arg0: i32) -> (i32, i32) {
    %c0_i32 = arith.constant 0 : i32
    %c0_i32_0 = arith.constant 0 : i32
    %c0_i32_1 = arith.constant 0 : i32
    return %c0_i32, %c0_i32_0 : i32, i32
  }
  func.func @transform_8(%arg0: i32) -> (i32, i32, i32) {
    %c0_i32 = arith.constant 0 : i32
    %c0_i32_0 = arith.constant 0 : i32
    %c0_i32_1 = arith.constant 0 : i32
    %c0_i32_2 = arith.constant 0 : i32
    return %c0_i32, %c0_i32_0, %c0_i32_1 : i32, i32, i32
  }
  func.func @transform_9(%arg0: i32) -> (i32, i32, i32) {
    %c0_i32 = arith.constant 0 : i32
    %c0_i32_0 = arith.constant 0 : i32
    %c0_i32_1 = arith.constant 0 : i32
    %c0_i32_2 = arith.constant 0 : i32
    return %c0_i32, %c0_i32_0, %c0_i32_1 : i32, i32, i32
  }
  func.func @transform_10(%arg0: i32) -> (i32, i32, i32) {
    %c0_i32 = arith.constant 0 : i32
    %c0_i32_0 = arith.constant 0 : i32
    %c0_i32_1 = arith.constant 0 : i32
    %c0_i32_2 = arith.constant 0 : i32
    return %c0_i32, %c0_i32_0, %c0_i32_1 : i32, i32, i32
  }
  func.func @transform_11(%arg0: i32) -> (i32, i32, i32) {
    %c0_i32 = arith.constant 0 : i32
    %c0_i32_0 = arith.constant 0 : i32
    %c0_i32_1 = arith.constant 0 : i32
    %c0_i32_2 = arith.constant 0 : i32
    return %c0_i32, %c0_i32_0, %c0_i32_1 : i32, i32, i32
  }
  func.func @transform_12(%arg0: i32) -> (i32, i32, i32) {
    %c0_i32 = arith.constant 0 : i32
    %c0_i32_0 = arith.constant 0 : i32
    %c0_i32_1 = arith.constant 0 : i32
    %c0_i32_2 = arith.constant 0 : i32
    return %c0_i32, %c0_i32_0, %c0_i32_1 : i32, i32, i32
  }
  func.func @transform_13(%arg0: i32) -> (i32, i32, i32) {
    %c0_i32 = arith.constant 0 : i32
    %c0_i32_0 = arith.constant 0 : i32
    %c0_i32_1 = arith.constant 0 : i32
    %c0_i32_2 = arith.constant 0 : i32
    return %c0_i32, %c0_i32_0, %c0_i32_1 : i32, i32, i32
  }
  func.func @transform_14(%arg0: i32) -> (i32, i32, i32) {
    %c0_i32 = arith.constant 0 : i32
    %c0_i32_0 = arith.constant 0 : i32
    %c0_i32_1 = arith.constant 0 : i32
    %c0_i32_2 = arith.constant 0 : i32
    return %c0_i32, %c0_i32_0, %c0_i32_1 : i32, i32, i32
  }
  func.func @transform_15(%arg0: i32) -> (i32, i32, i32) {
    %c0_i32 = arith.constant 0 : i32
    %c0_i32_0 = arith.constant 0 : i32
    %c0_i32_1 = arith.constant 0 : i32
    %c0_i32_2 = arith.constant 0 : i32
    return %c0_i32, %c0_i32_0, %c0_i32_1 : i32, i32, i32
  }
  func.func @transform_16(%arg0: i32) -> (i32, i32, i32) {
    %c0_i32 = arith.constant 0 : i32
    %c0_i32_0 = arith.constant 0 : i32
    %c0_i32_1 = arith.constant 0 : i32
    %c0_i32_2 = arith.constant 0 : i32
    return %c0_i32, %c0_i32_0, %c0_i32_1 : i32, i32, i32
  }
  func.func @transform_17(%arg0: i32) -> (i32, i32, i32) {
    %c0_i32 = arith.constant 0 : i32
    %c0_i32_0 = arith.constant 0 : i32
    %c0_i32_1 = arith.constant 0 : i32
    %c0_i32_2 = arith.constant 0 : i32
    return %c0_i32, %c0_i32_0, %c0_i32_1 : i32, i32, i32
  }
  func.func @transform_18(%arg0: i32) -> (i32, i32) {
    %c0_i32 = arith.constant 0 : i32
    %c0_i32_0 = arith.constant 0 : i32
    %c0_i32_1 = arith.constant 0 : i32
    return %c0_i32, %c0_i32_0 : i32, i32
  }
  func.func @transform_19(%arg0: i32) -> (i32, i32) {
    %c0_i32 = arith.constant 0 : i32
    %c0_i32_0 = arith.constant 0 : i32
    %c0_i32_1 = arith.constant 0 : i32
    return %c0_i32, %c0_i32_0 : i32, i32
  }
  func.func @transform_20(%arg0: i32) -> (i32, i32) {
    %c0_i32 = arith.constant 0 : i32
    %c0_i32_0 = arith.constant 0 : i32
    %c0_i32_1 = arith.constant 0 : i32
    return %c0_i32, %c0_i32_0 : i32, i32
  }
  func.func @transform_21(%arg0: i32) -> (i32, i32, i32, i32) {
    %c0_i32 = arith.constant 0 : i32
    %c0_i32_0 = arith.constant 0 : i32
    %c0_i32_1 = arith.constant 0 : i32
    %c0_i32_2 = arith.constant 0 : i32
    return %arg0, %c0_i32, %c0_i32_0, %c0_i32_1 : i32, i32, i32, i32
  }
}

</mosaic_0001>

<llo_original>
// kernel: run.1
$region0: #{run.1}
  #allocation0 [shape = 'u32[]', space=smem, size = 0x4, offset = 0x4, fixed_abs, tag = 'smem constant byte address 0x4 - core index']
  #allocation1 [shape = 'u32[144,128]{1,0:T(1,128)}', space=vmem, size = 0x12000, scoped, tag = 'internal scratch']
  #allocation2 [shape = 'f32[18,128]{1,0:T(8,128)}', space=vmem, size = 0x3000, scoped, tag = 'scratch operand']
  %s0 = inlined_call_operand.hbm [shape: f32[3,2], index: 0, kind: input, shape index: {}]
  %s1 = inlined_call_operand.vmem [shape: f32[2,15,16], index: 1, kind: input, shape index: {}]
  %s2 = inlined_call_operand.vmem [shape: bf16[16,64], index: 2, kind: input, shape index: {}]
  %s3 = inlined_call_operand.hbm [shape: bf16[16,64], index: 3, kind: input, shape index: {}]
  %s4 = inlined_call_operand.vmem [shape: f32[1,64], index: 4, kind: input, shape index: {}]
  %s5 = inlined_call_operand.hbm [shape: f32[1,64], index: 5, kind: input, shape index: {}]
  %s6 = inlined_call_operand.vmem [shape: bf16[64,64], index: 6, kind: input, shape index: {}]
  %s7 = inlined_call_operand.hbm [shape: f32[1,64], index: 7, kind: input, shape index: {}]
  %s8 = inlined_call_operand.hbm [shape: bf16[2,64,128], index: 8, kind: input, shape index: {}]
  %s9 = inlined_call_operand.hbm [shape: f32[2,1,128], index: 9, kind: input, shape index: {}]
  %s10 = inlined_call_operand.hbm [shape: f32[2,1,128], index: 10, kind: input, shape index: {}]
  %s11 = inlined_call_operand.hbm [shape: f32[2,1,128], index: 11, kind: input, shape index: {}]
  %s12 = inlined_call_operand.hbm [shape: f32[2,3,128], index: 12, kind: input, shape index: {}]
  %s13 = inlined_call_operand.hbm [shape: f32[2,1,128], index: 13, kind: input, shape index: {}]
  %s14 = inlined_call_operand.hbm [shape: f32[2,1,128], index: 14, kind: input, shape index: {}]
  %s15 = inlined_call_operand.hbm [shape: f32[2,1,128], index: 15, kind: input, shape index: {}]
  %s16 = inlined_call_operand.vmem [shape: bf16[2,128,64], index: 16, kind: input, shape index: {}]
  %s17 = inlined_call_operand.hbm [shape: f32[2,1,64], index: 17, kind: input, shape index: {}]
  %s18 = inlined_call_operand.hbm [shape: bf16[64,128], index: 18, kind: input, shape index: {}]
  %s19 = inlined_call_operand.hbm [shape: f32[1,128], index: 19, kind: input, shape index: {}]
  %s20 = inlined_call_operand.hbm [shape: bf16[64,32], index: 20, kind: input, shape index: {}]
  %s21 = inlined_call_operand.vmem [shape: f32[2,2,14,32], index: 21, kind: output, shape index: {}]
  %s22 = sld [smem:[#allocation0]]
  $region181: #{run.1} parent=0
    _
  %s24 = ssub.s32 1, %s22
  %s25 = scalar_select 0, %s24, %s22
  $region1: #{run.1} parent=0
    #allocation3 [shape = 'u8[2048]{0}', space=smem, size = 0x800, scoped, tag = 'input window, operand 0, single buffered']
    #allocation4 [shape = 's32[2]{0}', space=sflag, size = 0x8, scoped, tag = 'scoped memory for run.1']
    #allocation5 [shape = 's32[2]{0}', space=sflag, size = 0x8, scoped, tag = 'scoped memory for run.1']
    #allocation6 [shape = 'u8[4096]{0}', space=vmem, size = 0x1000, scoped, tag = 'input window, operand 3, single buffered']
    #allocation7 [shape = 'u8[512]{0}', space=vmem, size = 0x400, scoped, tag = 'input window, operand 5, single buffered']
    #allocation8 [shape = 's32[1]{0}', space=sflag, size = 0x4, scoped, tag = 'scoped memory for run.1']
    #allocation9 [shape = 'u8[512]{0}', space=vmem, size = 0x400, scoped, tag = 'input window, operand 7, single buffered']
    #allocation10 [shape = 'u8[32768]{0}', space=vmem, size = 0x8000, scoped, tag = 'input window, operand 8, single buffered']
    #allocation11 [shape = 's32[1]{0}', space=sflag, size = 0x4, scoped, tag = 'scoped memory for run.1']
    #allocation12 [shape = 'u8[1024]{0}', space=vmem, size = 0x400, scoped, tag = 'input window, operand 9, single buffered']
    #allocation13 [shape = 'u8[1024]{0}', space=vmem, size = 0x400, scoped, tag = 'input window, operand 10, single buffered']
    #allocation14 [shape = 's32[1]{0}', space=sflag, size = 0x4, scoped, tag = 'scoped memory for run.1']
    #allocation15 [shape = 'u8[1024]{0}', space=vmem, size = 0x400, scoped, tag = 'input window, operand 11, single buffered']
    #allocation16 [shape = 'u8[4096]{0}', space=vmem, size = 0x1000, scoped, tag = 'input window, operand 12, single buffered']
    #allocation17 [shape = 's32[1]{0}', space=sflag, size = 0x4, scoped, tag = 'scoped memory for run.1']
    #allocation18 [shape = 'u8[1024]{0}', space=vmem, size = 0x400, scoped, tag = 'input window, operand 13, single buffered']
    #allocation19 [shape = 'u8[1024]{0}', space=vmem, size = 0x400, scoped, tag = 'input window, operand 14, single buffered']
    #allocation20 [shape = 's32[1]{0}', space=sflag, size = 0x4, scoped, tag = 'scoped memory for run.1']
    #allocation21 [shape = 'u8[1024]{0}', space=vmem, size = 0x400, scoped, tag = 'input window, operand 15, single buffered']
    #allocation22 [shape = 'u8[1024]{0}', space=vmem, size = 0x400, scoped, tag = 'input window, operand 17, single buffered']
    #allocation23 [shape = 's32[1]{0}', space=sflag, size = 0x4, scoped, tag = 'scoped memory for run.1']
    #allocation24 [shape = 'u8[16384]{0}', space=vmem, size = 0x4000, scoped, tag = 'input window, operand 18, single buffered']
    #allocation25 [shape = 'u8[512]{0}', space=vmem, size = 0x400, scoped, tag = 'input window, operand 19, single buffered']
    #allocation26 [shape = 's32[1]{0}', space=sflag, size = 0x4, scoped, tag = 'scoped memory for run.1']
    #allocation27 [shape = 'u8[16384]{0}', space=vmem, size = 0x4000, scoped, tag = 'input window, operand 20, single buffered']
    %26 = vsyncpa [#allocation5], 0
    %27 = vsyncpa [#allocation4], 0
    %28 = vsyncpa [#allocation8], 0
    %29 = vsyncpa [#allocation11], 0
    %30 = vsyncpa [#allocation14], 0
    %31 = vsyncpa [#allocation17], 0
    %32 = vsyncpa [#allocation20], 0
    %33 = vsyncpa [#allocation23], 0
    %34 = vsyncpa [#allocation26], 0
    loop: start=0, step=1, limit=4
    $region2: #{run.1} parent=1 // loop_pre_header
      _
    $region3: #{run.1} parent=1 // loop_header
      %s36 = sphi 0, %s40
      %p37 = scmp.ge.s32.totalorder %s36, 4
      %s44 = sphi 0, %s44
      %s46 = sphi 0, %s44
      %s47 = sphi 0, %s46
      %s61 = sphi 0, %s47
      %s67 = sphi 0, %s69
      %s70 = sphi 0, %s67
      %s71 = sphi 0, %s70
      %s87 = sphi 0, %s71
      %s91 = sphi 0, %s91
      %s93 = sphi 0, %s91
      %s94 = sphi 0, %s93
      %s108 = sphi 0, %s94
      %s112 = sphi 0, %s112
      %s114 = sphi 0, %s112
      %s115 = sphi 0, %s114
      %s129 = sphi 0, %s115
      %s133 = sphi 0, %s133
      %s135 = sphi 0, %s133
      %s136 = sphi 0, %s135
      %s150 = sphi 0, %s136
      %s154 = sphi 0, %s154
      %s156 = sphi 0, %s154
      %s157 = sphi 0, %s156
      %s171 = sphi 0, %s157
      %s175 = sphi 0, %s175
      %s177 = sphi 0, %s175
      %s178 = sphi 0, %s177
      %s192 = sphi 0, %s178
      %s196 = sphi 0, %s196
      %s198 = sphi 0, %s196
      %s199 = sphi 0, %s198
      %s213 = sphi 0, %s199
      %s217 = sphi 0, %s217
      %s219 = sphi 0, %s217
      %s220 = sphi 0, %s219
      %s234 = sphi 0, %s220
      %s238 = sphi 0, %s238
      %s240 = sphi 0, %s238
      %s241 = sphi 0, %s240
      %s255 = sphi 0, %s241
      %s259 = sphi 0, %s259
      %s261 = sphi 0, %s259
      %s262 = sphi 0, %s261
      %s276 = sphi 0, %s262
      %s280 = sphi 0, %s280
      %s282 = sphi 0, %s280
      %s283 = sphi 0, %s282
      %s297 = sphi 0, %s283
      %s301 = sphi 0, %s301
      %s303 = sphi 0, %s301
      %s304 = sphi 0, %s303
      %s318 = sphi 0, %s304
      %s322 = sphi 0, %s322
      %s324 = sphi 0, %s322
      %s325 = sphi 0, %s324
      %s339 = sphi 0, %s325
      %s343 = sphi 0, %s343
      %s345 = sphi 0, %s343
      %s346 = sphi 0, %s345
      %s360 = sphi 0, %s346
      %s364 = sphi 0, %s364
      %s366 = sphi 0, %s364
      %s367 = sphi 0, %s366
      %s381 = sphi 0, %s367
      %s385 = sphi 0, %s385
      %s387 = sphi 0, %s385
      %s388 = sphi 0, %s387
      %s402 = sphi 0, %s388
      %s406 = sphi 0, %s406
      %s408 = sphi 0, %s406
      %s409 = sphi 0, %s408
      %s423 = sphi 0, %s409
      %s427 = sphi 0, %s427
      %s429 = sphi 0, %s427
      %s430 = sphi 0, %s429
      %s444 = sphi 0, %s430
      %s448 = sphi 0, %s448
      %s450 = sphi 0, %s448
      %s451 = sphi 0, %s450
      %s465 = sphi 0, %s451
      %s469 = sphi 0, %s469
      %s471 = sphi 0, %s469
      %s472 = sphi 0, %s471
      %s486 = sphi 0, %s472
      %s492 = sphi 0, %s494
      %s495 = sphi 0, %s492
      %s496 = sphi 0, %s495
      %s512 = sphi 0, %s496
    $region4: #{run.1} parent=1 // loop_header_branch
      %39 = sbr.rel (%p37) target = $region8
    $region5: #{run.1} parent=1 // loop_body
      %s41 = ssub.s32 %s36, 1
      %s42 = ssub.s32 %s36, 2
      %s43 = sadd.s32 %s36, 1
      %s45 = sadd.s32 %s44, 1
      %p48 = scmp.eq.s32.totalorder %s36, 1
      %p49 = scmp.ne.s32.totalorder %s44, %s46
      %p50 = scmp.eq.s32.totalorder %s36, 0
      %p51 = por %p49, %p50
      %p52 = scmp.ne.s32.totalorder %s44, %s46
      %p53 = scmp.eq.s32.totalorder %s41, 1
      %p54 = por %p52, %p53
      %p55 = scmp.ne.s32.totalorder %s46, %s47
      %p56 = scmp.eq.s32.totalorder %s41, 0
      %p57 = por %p55, %p56
      %p58 = scmp.ne.s32.totalorder %s46, %s47
      %p59 = scmp.eq.s32.totalorder %s42, 1
      %p60 = por %p58, %p59
      %p62 = scmp.ne.s32.totalorder %s47, %s61
      %p63 = scmp.eq.s32.totalorder %s42, 0
      %p64 = por %p62, %p63
      %s65 = ssub.s32 %s36, %s43
      %p66 = scmp.eq.s32.totalorder %s65, 0
      %s68 = sadd.s32 %s67, 1
      %s69 = scalar_select %p66, %s67, %s68
      %p72 = pneg %p66
      %p73 = scmp.eq.s32.totalorder %s36, 1
      %p74 = por %p72, %p73
      %p75 = scmp.ne.s32.totalorder %s67, %s70
      %p76 = scmp.eq.s32.totalorder %s36, 0
      %p77 = por %p75, %p76
      %p78 = scmp.ne.s32.totalorder %s67, %s70
      %p79 = scmp.eq.s32.totalorder %s41, 1
      %p80 = por %p78, %p79
      %p81 = scmp.ne.s32.totalorder %s70, %s71
      %p82 = scmp.eq.s32.totalorder %s41, 0
      %p83 = por %p81, %p82
      %p84 = scmp.ne.s32.totalorder %s70, %s71
      %p85 = scmp.eq.s32.totalorder %s42, 1
      %p86 = por %p84, %p85
      %p88 = scmp.ne.s32.totalorder %s71, %s87
      %p89 = scmp.eq.s32.totalorder %s42, 0
      %p90 = por %p88, %p89
      %s92 = sadd.s32 %s91, 1
      %p95 = scmp.eq.s32.totalorder %s36, 1
      %p96 = scmp.ne.s32.totalorder %s91, %s93
      %p97 = scmp.eq.s32.totalorder %s36, 0
      %p98 = por %p96, %p97
      %p99 = scmp.ne.s32.totalorder %s91, %s93
      %p100 = scmp.eq.s32.totalorder %s41, 1
      %p101 = por %p99, %p100
      %p102 = scmp.ne.s32.totalorder %s93, %s94
      %p103 = scmp.eq.s32.totalorder %s41, 0
      %p104 = por %p102, %p103
      %p105 = scmp.ne.s32.totalorder %s93, %s94
      %p106 = scmp.eq.s32.totalorder %s42, 1
      %p107 = por %p105, %p106
      %p109 = scmp.ne.s32.totalorder %s94, %s108
      %p110 = scmp.eq.s32.totalorder %s42, 0
      %p111 = por %p109, %p110
      %s113 = sadd.s32 %s112, 1
      %p116 = scmp.eq.s32.totalorder %s36, 1
      %p117 = scmp.ne.s32.totalorder %s112, %s114
      %p118 = scmp.eq.s32.totalorder %s36, 0
      %p119 = por %p117, %p118
      %p120 = scmp.ne.s32.totalorder %s112, %s114
      %p121 = scmp.eq.s32.totalorder %s41, 1
      %p122 = por %p120, %p121
      %p123 = scmp.ne.s32.totalorder %s114, %s115
      %p124 = scmp.eq.s32.totalorder %s41, 0
      %p125 = por %p123, %p124
      %p126 = scmp.ne.s32.totalorder %s114, %s115
      %p127 = scmp.eq.s32.totalorder %s42, 1
      %p128 = por %p126, %p127
      %p130 = scmp.ne.s32.totalorder %s115, %s129
      %p131 = scmp.eq.s32.totalorder %s42, 0
      %p132 = por %p130, %p131
      %s134 = sadd.s32 %s133, 1
      %p137 = scmp.eq.s32.totalorder %s36, 1
      %p138 = scmp.ne.s32.totalorder %s133, %s135
      %p139 = scmp.eq.s32.totalorder %s36, 0
      %p140 = por %p138, %p139
      %p141 = scmp.ne.s32.totalorder %s133, %s135
      %p142 = scmp.eq.s32.totalorder %s41, 1
      %p143 = por %p141, %p142
      %p144 = scmp.ne.s32.totalorder %s135, %s136
      %p145 = scmp.eq.s32.totalorder %s41, 0
      %p146 = por %p144, %p145
      %p147 = scmp.ne.s32.totalorder %s135, %s136
      %p148 = scmp.eq.s32.totalorder %s42, 1
      %p149 = por %p147, %p148
      %p151 = scmp.ne.s32.totalorder %s136, %s150
      %p152 = scmp.eq.s32.totalorder %s42, 0
      %p153 = por %p151, %p152
      %s155 = sadd.s32 %s154, 1
      %p158 = scmp.eq.s32.totalorder %s36, 1
      %p159 = scmp.ne.s32.totalorder %s154, %s156
      %p160 = scmp.eq.s32.totalorder %s36, 0
      %p161 = por %p159, %p160
      %p162 = scmp.ne.s32.totalorder %s154, %s156
      %p163 = scmp.eq.s32.totalorder %s41, 1
      %p164 = por %p162, %p163
      %p165 = scmp.ne.s32.totalorder %s156, %s157
      %p166 = scmp.eq.s32.totalorder %s41, 0
      %p167 = por %p165, %p166
      %p168 = scmp.ne.s32.totalorder %s156, %s157
      %p169 = scmp.eq.s32.totalorder %s42, 1
      %p170 = por %p168, %p169
      %p172 = scmp.ne.s32.totalorder %s157, %s171
      %p173 = scmp.eq.s32.totalorder %s42, 0
      %p174 = por %p172, %p173
      %s176 = sadd.s32 %s175, 1
      %p179 = scmp.eq.s32.totalorder %s36, 1
      %p180 = scmp.ne.s32.totalorder %s175, %s177
      %p181 = scmp.eq.s32.totalorder %s36, 0
      %p182 = por %p180, %p181
      %p183 = scmp.ne.s32.totalorder %s175, %s177
      %p184 = scmp.eq.s32.totalorder %s41, 1
      %p185 = por %p183, %p184
      %p186 = scmp.ne.s32.totalorder %s177, %s178
      %p187 = scmp.eq.s32.totalorder %s41, 0
      %p188 = por %p186, %p187
      %p189 = scmp.ne.s32.totalorder %s177, %s178
      %p190 = scmp.eq.s32.totalorder %s42, 1
      %p191 = por %p189, %p190
      %p193 = scmp.ne.s32.totalorder %s178, %s192
      %p194 = scmp.eq.s32.totalorder %s42, 0
      %p195 = por %p193, %p194
      %s197 = sadd.s32 %s196, 1
      %p200 = scmp.eq.s32.totalorder %s36, 1
      %p201 = scmp.ne.s32.totalorder %s196, %s198
      %p202 = scmp.eq.s32.totalorder %s36, 0
      %p203 = por %p201, %p202
      %p204 = scmp.ne.s32.totalorder %s196, %s198
      %p205 = scmp.eq.s32.totalorder %s41, 1
      %p206 = por %p204, %p205
      %p207 = scmp.ne.s32.totalorder %s198, %s199
      %p208 = scmp.eq.s32.totalorder %s41, 0
      %p209 = por %p207, %p208
      %p210 = scmp.ne.s32.totalorder %s198, %s199
      %p211 = scmp.eq.s32.totalorder %s42, 1
      %p212 = por %p210, %p211
      %p214 = scmp.ne.s32.totalorder %s199, %s213
      %p215 = scmp.eq.s32.totalorder %s42, 0
      %p216 = por %p214, %p215
      %s218 = sadd.s32 %s217, 1
      %p221 = scmp.eq.s32.totalorder %s36, 1
      %p222 = scmp.ne.s32.totalorder %s217, %s219
      %p223 = scmp.eq.s32.totalorder %s36, 0
      %p224 = por %p222, %p223
      %p225 = scmp.ne.s32.totalorder %s217, %s219
      %p226 = scmp.eq.s32.totalorder %s41, 1
      %p227 = por %p225, %p226
      %p228 = scmp.ne.s32.totalorder %s219, %s220
      %p229 = scmp.eq.s32.totalorder %s41, 0
      %p230 = por %p228, %p229
      %p231 = scmp.ne.s32.totalorder %s219, %s220
      %p232 = scmp.eq.s32.totalorder %s42, 1
      %p233 = por %p231, %p232
      %p235 = scmp.ne.s32.totalorder %s220, %s234
      %p236 = scmp.eq.s32.totalorder %s42, 0
      %p237 = por %p235, %p236
      %s239 = sadd.s32 %s238, 1
      %p242 = scmp.eq.s32.totalorder %s36, 1
      %p243 = scmp.ne.s32.totalorder %s238, %s240
      %p244 = scmp.eq.s32.totalorder %s36, 0
      %p245 = por %p243, %p244
      %p246 = scmp.ne.s32.totalorder %s238, %s240
      %p247 = scmp.eq.s32.totalorder %s41, 1
      %p248 = por %p246, %p247
      %p249 = scmp.ne.s32.totalorder %s240, %s241
      %p250 = scmp.eq.s32.totalorder %s41, 0
      %p251 = por %p249, %p250
      %p252 = scmp.ne.s32.totalorder %s240, %s241
      %p253 = scmp.eq.s32.totalorder %s42, 1
      %p254 = por %p252, %p253
      %p256 = scmp.ne.s32.totalorder %s241, %s255
      %p257 = scmp.eq.s32.totalorder %s42, 0
      %p258 = por %p256, %p257
      %s260 = sadd.s32 %s259, 1
      %p263 = scmp.eq.s32.totalorder %s36, 1
      %p264 = scmp.ne.s32.totalorder %s259, %s261
      %p265 = scmp.eq.s32.totalorder %s36, 0
      %p266 = por %p264, %p265
      %p267 = scmp.ne.s32.totalorder %s259, %s261
      %p268 = scmp.eq.s32.totalorder %s41, 1
      %p269 = por %p267, %p268
      %p270 = scmp.ne.s32.totalorder %s261, %s262
      %p271 = scmp.eq.s32.totalorder %s41, 0
      %p272 = por %p270, %p271
      %p273 = scmp.ne.s32.totalorder %s261, %s262
      %p274 = scmp.eq.s32.totalorder %s42, 1
      %p275 = por %p273, %p274
      %p277 = scmp.ne.s32.totalorder %s262, %s276
      %p278 = scmp.eq.s32.totalorder %s42, 0
      %p279 = por %p277, %p278
      %s281 = sadd.s32 %s280, 1
      %p284 = scmp.eq.s32.totalorder %s36, 1
      %p285 = scmp.ne.s32.totalorder %s280, %s282
      %p286 = scmp.eq.s32.totalorder %s36, 0
      %p287 = por %p285, %p286
      %p288 = scmp.ne.s32.totalorder %s280, %s282
      %p289 = scmp.eq.s32.totalorder %s41, 1
      %p290 = por %p288, %p289
      %p291 = scmp.ne.s32.totalorder %s282, %s283
      %p292 = scmp.eq.s32.totalorder %s41, 0
      %p293 = por %p291, %p292
      %p294 = scmp.ne.s32.totalorder %s282, %s283
      %p295 = scmp.eq.s32.totalorder %s42, 1
      %p296 = por %p294, %p295
      %p298 = scmp.ne.s32.totalorder %s283, %s297
      %p299 = scmp.eq.s32.totalorder %s42, 0
      %p300 = por %p298, %p299
      %s302 = sadd.s32 %s301, 1
      %p305 = scmp.eq.s32.totalorder %s36, 1
      %p306 = scmp.ne.s32.totalorder %s301, %s303
      %p307 = scmp.eq.s32.totalorder %s36, 0
      %p308 = por %p306, %p307
      %p309 = scmp.ne.s32.totalorder %s301, %s303
      %p310 = scmp.eq.s32.totalorder %s41, 1
      %p311 = por %p309, %p310
      %p312 = scmp.ne.s32.totalorder %s303, %s304
      %p313 = scmp.eq.s32.totalorder %s41, 0
      %p314 = por %p312, %p313
      %p315 = scmp.ne.s32.totalorder %s303, %s304
      %p316 = scmp.eq.s32.totalorder %s42, 1
      %p317 = por %p315, %p316
      %p319 = scmp.ne.s32.totalorder %s304, %s318
      %p320 = scmp.eq.s32.totalorder %s42, 0
      %p321 = por %p319, %p320
      %s323 = sadd.s32 %s322, 1
      %p326 = scmp.eq.s32.totalorder %s36, 1
      %p327 = scmp.ne.s32.totalorder %s322, %s324
      %p328 = scmp.eq.s32.totalorder %s36, 0
      %p329 = por %p327, %p328
      %p330 = scmp.ne.s32.totalorder %s322, %s324
      %p331 = scmp.eq.s32.totalorder %s41, 1
      %p332 = por %p330, %p331
      %p333 = scmp.ne.s32.totalorder %s324, %s325
      %p334 = scmp.eq.s32.totalorder %s41, 0
      %p335 = por %p333, %p334
      %p336 = scmp.ne.s32.totalorder %s324, %s325
      %p337 = scmp.eq.s32.totalorder %s42, 1
      %p338 = por %p336, %p337
      %p340 = scmp.ne.s32.totalorder %s325, %s339
      %p341 = scmp.eq.s32.totalorder %s42, 0
      %p342 = por %p340, %p341
      %s344 = sadd.s32 %s343, 1
      %p347 = scmp.eq.s32.totalorder %s36, 1
      %p348 = scmp.ne.s32.totalorder %s343, %s345
      %p349 = scmp.eq.s32.totalorder %s36, 0
      %p350 = por %p348, %p349
      %p351 = scmp.ne.s32.totalorder %s343, %s345
      %p352 = scmp.eq.s32.totalorder %s41, 1
      %p353 = por %p351, %p352
      %p354 = scmp.ne.s32.totalorder %s345, %s346
      %p355 = scmp.eq.s32.totalorder %s41, 0
      %p356 = por %p354, %p355
      %p357 = scmp.ne.s32.totalorder %s345, %s346
      %p358 = scmp.eq.s32.totalorder %s42, 1
      %p359 = por %p357, %p358
      %p361 = scmp.ne.s32.totalorder %s346, %s360
      %p362 = scmp.eq.s32.totalorder %s42, 0
      %p363 = por %p361, %p362
      %s365 = sadd.s32 %s364, 1
      %p368 = scmp.eq.s32.totalorder %s36, 1
      %p369 = scmp.ne.s32.totalorder %s364, %s366
      %p370 = scmp.eq.s32.totalorder %s36, 0
      %p371 = por %p369, %p370
      %p372 = scmp.ne.s32.totalorder %s364, %s366
      %p373 = scmp.eq.s32.totalorder %s41, 1
      %p374 = por %p372, %p373
      %p375 = scmp.ne.s32.totalorder %s366, %s367
      %p376 = scmp.eq.s32.totalorder %s41, 0
      %p377 = por %p375, %p376
      %p378 = scmp.ne.s32.totalorder %s366, %s367
      %p379 = scmp.eq.s32.totalorder %s42, 1
      %p380 = por %p378, %p379
      %p382 = scmp.ne.s32.totalorder %s367, %s381
      %p383 = scmp.eq.s32.totalorder %s42, 0
      %p384 = por %p382, %p383
      %s386 = sadd.s32 %s385, 1
      %p389 = scmp.eq.s32.totalorder %s36, 1
      %p390 = scmp.ne.s32.totalorder %s385, %s387
      %p391 = scmp.eq.s32.totalorder %s36, 0
      %p392 = por %p390, %p391
      %p393 = scmp.ne.s32.totalorder %s385, %s387
      %p394 = scmp.eq.s32.totalorder %s41, 1
      %p395 = por %p393, %p394
      %p396 = scmp.ne.s32.totalorder %s387, %s388
      %p397 = scmp.eq.s32.totalorder %s41, 0
      %p398 = por %p396, %p397
      %p399 = scmp.ne.s32.totalorder %s387, %s388
      %p400 = scmp.eq.s32.totalorder %s42, 1
      %p401 = por %p399, %p400
      %p403 = scmp.ne.s32.totalorder %s388, %s402
      %p404 = scmp.eq.s32.totalorder %s42, 0
      %p405 = por %p403, %p404
      %s407 = sadd.s32 %s406, 1
      %p410 = scmp.eq.s32.totalorder %s36, 1
      %p411 = scmp.ne.s32.totalorder %s406, %s408
      %p412 = scmp.eq.s32.totalorder %s36, 0
      %p413 = por %p411, %p412
      %p414 = scmp.ne.s32.totalorder %s406, %s408
      %p415 = scmp.eq.s32.totalorder %s41, 1
      %p416 = por %p414, %p415
      %p417 = scmp.ne.s32.totalorder %s408, %s409
      %p418 = scmp.eq.s32.totalorder %s41, 0
      %p419 = por %p417, %p418
      %p420 = scmp.ne.s32.totalorder %s408, %s409
      %p421 = scmp.eq.s32.totalorder %s42, 1
      %p422 = por %p420, %p421
      %p424 = scmp.ne.s32.totalorder %s409, %s423
      %p425 = scmp.eq.s32.totalorder %s42, 0
      %p426 = por %p424, %p425
      %s428 = sadd.s32 %s427, 1
      %p431 = scmp.eq.s32.totalorder %s36, 1
      %p432 = scmp.ne.s32.totalorder %s427, %s429
      %p433 = scmp.eq.s32.totalorder %s36, 0
      %p434 = por %p432, %p433
      %p435 = scmp.ne.s32.totalorder %s427, %s429
      %p436 = scmp.eq.s32.totalorder %s41, 1
      %p437 = por %p435, %p436
      %p438 = scmp.ne.s32.totalorder %s429, %s430
      %p439 = scmp.eq.s32.totalorder %s41, 0
      %p440 = por %p438, %p439
      %p441 = scmp.ne.s32.totalorder %s429, %s430
      %p442 = scmp.eq.s32.totalorder %s42, 1
      %p443 = por %p441, %p442
      %p445 = scmp.ne.s32.totalorder %s430, %s444
      %p446 = scmp.eq.s32.totalorder %s42, 0
      %p447 = por %p445, %p446
      %s449 = sadd.s32 %s448, 1
      %p452 = scmp.eq.s32.totalorder %s36, 1
      %p453 = scmp.ne.s32.totalorder %s448, %s450
      %p454 = scmp.eq.s32.totalorder %s36, 0
      %p455 = por %p453, %p454
      %p456 = scmp.ne.s32.totalorder %s448, %s450
      %p457 = scmp.eq.s32.totalorder %s41, 1
      %p458 = por %p456, %p457
      %p459 = scmp.ne.s32.totalorder %s450, %s451
      %p460 = scmp.eq.s32.totalorder %s41, 0
      %p461 = por %p459, %p460
      %p462 = scmp.ne.s32.totalorder %s450, %s451
      %p463 = scmp.eq.s32.totalorder %s42, 1
      %p464 = por %p462, %p463
      %p466 = scmp.ne.s32.totalorder %s451, %s465
      %p467 = scmp.eq.s32.totalorder %s42, 0
      %p468 = por %p466, %p467
      %s470 = sadd.s32 %s469, 1
      %p473 = scmp.eq.s32.totalorder %s36, 1
      %p474 = scmp.ne.s32.totalorder %s469, %s471
      %p475 = scmp.eq.s32.totalorder %s36, 0
      %p476 = por %p474, %p475
      %p477 = scmp.ne.s32.totalorder %s469, %s471
      %p478 = scmp.eq.s32.totalorder %s41, 1
      %p479 = por %p477, %p478
      %p480 = scmp.ne.s32.totalorder %s471, %s472
      %p481 = scmp.eq.s32.totalorder %s41, 0
      %p482 = por %p480, %p481
      %p483 = scmp.ne.s32.totalorder %s471, %s472
      %p484 = scmp.eq.s32.totalorder %s42, 1
      %p485 = por %p483, %p484
      %p487 = scmp.ne.s32.totalorder %s472, %s486
      %p488 = scmp.eq.s32.totalorder %s42, 0
      %p489 = por %p487, %p488
      %s490 = ssub.s32 %s36, %s43
      %p491 = scmp.eq.s32.totalorder %s490, 0
      %s493 = sadd.s32 %s492, 1
      %s494 = scalar_select %p491, %s492, %s493
      %p497 = pneg %p491
      %p498 = scmp.eq.s32.totalorder %s36, 1
      %p499 = por %p497, %p498
      %p500 = scmp.ne.s32.totalorder %s492, %s495
      %p501 = scmp.eq.s32.totalorder %s36, 0
      %p502 = por %p500, %p501
      %p503 = scmp.ne.s32.totalorder %s492, %s495
      %p504 = scmp.eq.s32.totalorder %s41, 1
      %p505 = por %p503, %p504
      %p506 = scmp.ne.s32.totalorder %s495, %s496
      %p507 = scmp.eq.s32.totalorder %s41, 0
      %p508 = por %p506, %p507
      %p509 = scmp.ne.s32.totalorder %s495, %s496
      %p510 = scmp.eq.s32.totalorder %s42, 1
      %p511 = por %p509, %p510
      %p513 = scmp.ne.s32.totalorder %s496, %s512
      %p514 = scmp.eq.s32.totalorder %s42, 0
      %p515 = por %p513, %p514
      %p516 = scmp.le.s32.totalorder 1, %s36
      %p517 = scmp.lt.s32.totalorder %s36, 3
      %p518 = pnand %p516, %p517
      %p519 = pneg %p518
      // Predicated region
      $region9: #{run.1} parent=5 // pred_check
        _
      $region10: #{run.1} parent=5 // pred_check_branch
        %521 = sbr.rel (%p518) target = $region12
      $region11: #{run.1} parent=5 // pred_region
        %s522 = ssub.s32 %s36, 1
        // Predicated region
        $region13: #{run.1} parent=11 // pred_check
          %p523 = pneg %p57
        $region14: #{run.1} parent=11 // pred_check_branch
          %525 = sbr.rel (%p523) target = $region16
        $region15: #{run.1} parent=11 // pred_region
          %s527 = ssub.s32 64, 64
          %528 = vsyncadd [#allocation5], %s527
          %531 = dma.hbm_to_smem %s0, 64, [#allocation3], [#allocation5]
        $region16: #{run.1} parent=11 // pred_fallthru
          _
        // Predicated region
        $region17: #{run.1} parent=11 // pred_check
          %p532 = pneg %p104
        $region18: #{run.1} parent=11 // pred_check_branch
          %534 = sbr.rel (%p532) target = $region20
        $region19: #{run.1} parent=11 // pred_region
          _
        $region20: #{run.1} parent=11 // pred_fallthru
          _
        // Predicated region
        $region21: #{run.1} parent=11 // pred_check
          %p535 = pneg %p125
        $region22: #{run.1} parent=11 // pred_check_branch
          %537 = sbr.rel (%p535) target = $region24
        $region23: #{run.1} parent=11 // pred_region
          %s539 = ssub.s32 128, 128
          %540 = vsyncadd [#allocation4], %s539
          %s541 = sshll.u32 [#allocation6], 4
          %s542 = int_to_ptr.vmem [resolvable:$true] %s541
          %547 = dma.hbm_to_vmem [thread:$0]  %s3, 128, %s542, [#allocation4], 64, 64, 4
        $region24: #{run.1} parent=11 // pred_fallthru
          _
        // Predicated region
        $region25: #{run.1} parent=11 // pred_check
          %p548 = pneg %p146
        $region26: #{run.1} parent=11 // pred_check_branch
          %550 = sbr.rel (%p548) target = $region28
        $region27: #{run.1} parent=11 // pred_region
          _
        $region28: #{run.1} parent=11 // pred_fallthru
          _
        // Predicated region
        $region29: #{run.1} parent=11 // pred_check
          %p551 = pneg %p167
        $region30: #{run.1} parent=11 // pred_check_branch
          %553 = sbr.rel (%p551) target = $region32
        $region31: #{run.1} parent=11 // pred_region
          %s555 = ssub.s32 16, 16
          %556 = vsyncadd [#allocation8], %s555
          %s558 = sshll.u32 [#allocation7], 4
          %s559 = int_to_ptr.vmem [resolvable:$true] %s558
          %561 = dma.hbm_to_vmem [thread:$0]  %s5, 16, %s559, [#allocation8]
        $region32: #{run.1} parent=11 // pred_fallthru
          _
        // Predicated region
        $region33: #{run.1} parent=11 // pred_check
          %p562 = pneg %p188
        $region34: #{run.1} parent=11 // pred_check_branch
          %564 = sbr.rel (%p562) target = $region36
        $region35: #{run.1} parent=11 // pred_region
          _
        $region36: #{run.1} parent=11 // pred_fallthru
          _
        // Predicated region
        $region37: #{run.1} parent=11 // pred_check
          %p565 = pneg %p209
        $region38: #{run.1} parent=11 // pred_check_branch
          %567 = sbr.rel (%p565) target = $region40
        $region39: #{run.1} parent=11 // pred_region
          %s569 = ssub.s32 16, 16
          %570 = vsyncadd [#allocation8], %s569
          %s572 = sshll.u32 [#allocation9], 4
          %s573 = int_to_ptr.vmem [resolvable:$true] %s572
          %575 = dma.hbm_to_vmem [thread:$0]  %s7, 16, %s573, [#allocation8]
        $region40: #{run.1} parent=11 // pred_fallthru
          _
        // Predicated region
        $region41: #{run.1} parent=11 // pred_check
          %p576 = pneg %p230
        $region42: #{run.1} parent=11 // pred_check_branch
          %578 = sbr.rel (%p576) target = $region44
        $region43: #{run.1} parent=11 // pred_region
          %s580 = ssub.s32 1024, 1024
          %581 = vsyncadd [#allocation11], %s580
          %s582 = sshll.u32 [#allocation10], 4
          %s583 = int_to_ptr.vmem [resolvable:$true] %s582
          %588 = dma.hbm_to_vmem [thread:$0]  %s8, 1024, %s583, [#allocation11], 64, 64, 4
        $region44: #{run.1} parent=11 // pred_fallthru
          _
        // Predicated region
        $region45: #{run.1} parent=11 // pred_check
          %p589 = pneg %p251
        $region46: #{run.1} parent=11 // pred_check_branch
          %591 = sbr.rel (%p589) target = $region48
        $region47: #{run.1} parent=11 // pred_region
          %s593 = ssub.s32 32, 32
          %594 = vsyncadd [#allocation11], %s593
          %s595 = sshll.u32 [#allocation12], 4
          %s596 = int_to_ptr.vmem [resolvable:$true] %s595
          %601 = dma.hbm_to_vmem [thread:$0]  %s9, 32, %s596, [#allocation11], 16, 16, 1
        $region48: #{run.1} parent=11 // pred_fallthru
          _
        // Predicated region
        $region49: #{run.1} parent=11 // pred_check
          %p602 = pneg %p272
        $region50: #{run.1} parent=11 // pred_check_branch
          %604 = sbr.rel (%p602) target = $region52
        $region51: #{run.1} parent=11 // pred_region
          %s606 = ssub.s32 32, 32
          %607 = vsyncadd [#allocation14], %s606
          %s608 = sshll.u32 [#allocation13], 4
          %s609 = int_to_ptr.vmem [resolvable:$true] %s608
          %614 = dma.hbm_to_vmem [thread:$0]  %s10, 32, %s609, [#allocation14], 16, 16, 1
        $region52: #{run.1} parent=11 // pred_fallthru
          _
        // Predicated region
        $region53: #{run.1} parent=11 // pred_check
          %p615 = pneg %p293
        $region54: #{run.1} parent=11 // pred_check_branch
          %617 = sbr.rel (%p615) target = $region56
        $region55: #{run.1} parent=11 // pred_region
          %s619 = ssub.s32 32, 32
          %620 = vsyncadd [#allocation14], %s619
          %s621 = sshll.u32 [#allocation15], 4
          %s622 = int_to_ptr.vmem [resolvable:$true] %s621
          %627 = dma.hbm_to_vmem [thread:$0]  %s11, 32, %s622, [#allocation14], 16, 16, 1
        $region56: #{run.1} parent=11 // pred_fallthru
          _
        // Predicated region
        $region57: #{run.1} parent=11 // pred_check
          %p628 = pneg %p314
        $region58: #{run.1} parent=11 // pred_check_branch
          %630 = sbr.rel (%p628) target = $region60
        $region59: #{run.1} parent=11 // pred_region
          %s632 = ssub.s32 128, 128
          %633 = vsyncadd [#allocation17], %s632
          %s634 = sshll.u32 [#allocation16], 4
          %s635 = int_to_ptr.vmem [resolvable:$true] %s634
          %640 = dma.hbm_to_vmem [thread:$0]  %s12, 128, %s635, [#allocation17], 64, 64, 4
        $region60: #{run.1} parent=11 // pred_fallthru
          _
        // Predicated region
        $region61: #{run.1} parent=11 // pred_check
          %p641 = pneg %p335
        $region62: #{run.1} parent=11 // pred_check_branch
          %643 = sbr.rel (%p641) target = $region64
        $region63: #{run.1} parent=11 // pred_region
          %s645 = ssub.s32 32, 32
          %646 = vsyncadd [#allocation17], %s645
          %s647 = sshll.u32 [#allocation18], 4
          %s648 = int_to_ptr.vmem [resolvable:$true] %s647
          %653 = dma.hbm_to_vmem [thread:$0]  %s13, 32, %s648, [#allocation17], 16, 16, 1
        $region64: #{run.1} parent=11 // pred_fallthru
          _
        // Predicated region
        $region65: #{run.1} parent=11 // pred_check
          %p654 = pneg %p356
        $region66: #{run.1} parent=11 // pred_check_branch
          %656 = sbr.rel (%p654) target = $region68
        $region67: #{run.1} parent=11 // pred_region
          %s658 = ssub.s32 32, 32
          %659 = vsyncadd [#allocation20], %s658
          %s660 = sshll.u32 [#allocation19], 4
          %s661 = int_to_ptr.vmem [resolvable:$true] %s660
          %666 = dma.hbm_to_vmem [thread:$0]  %s14, 32, %s661, [#allocation20], 16, 16, 1
        $region68: #{run.1} parent=11 // pred_fallthru
          _
        // Predicated region
        $region69: #{run.1} parent=11 // pred_check
          %p667 = pneg %p377
        $region70: #{run.1} parent=11 // pred_check_branch
          %669 = sbr.rel (%p667) target = $region72
        $region71: #{run.1} parent=11 // pred_region
          %s671 = ssub.s32 32, 32
          %672 = vsyncadd [#allocation20], %s671
          %s673 = sshll.u32 [#allocation21], 4
          %s674 = int_to_ptr.vmem [resolvable:$true] %s673
          %679 = dma.hbm_to_vmem [thread:$0]  %s15, 32, %s674, [#allocation20], 16, 16, 1
        $region72: #{run.1} parent=11 // pred_fallthru
          _
        // Predicated region
        $region73: #{run.1} parent=11 // pred_check
          %p680 = pneg %p398
        $region74: #{run.1} parent=11 // pred_check_branch
          %682 = sbr.rel (%p680) target = $region76
        $region75: #{run.1} parent=11 // pred_region
          _
        $region76: #{run.1} parent=11 // pred_fallthru
          _
        // Predicated region
        $region77: #{run.1} parent=11 // pred_check
          %p683 = pneg %p419
        $region78: #{run.1} parent=11 // pred_check_branch
          %685 = sbr.rel (%p683) target = $region80
        $region79: #{run.1} parent=11 // pred_region
          %s687 = ssub.s32 32, 32
          %688 = vsyncadd [#allocation23], %s687
          %s689 = sshll.u32 [#allocation22], 4
          %s690 = int_to_ptr.vmem [resolvable:$true] %s689
          %695 = dma.hbm_to_vmem [thread:$0]  %s17, 32, %s690, [#allocation23], 16, 16, 1
        $region80: #{run.1} parent=11 // pred_fallthru
          _
        // Predicated region
        $region81: #{run.1} parent=11 // pred_check
          %p696 = pneg %p440
        $region82: #{run.1} parent=11 // pred_check_branch
          %698 = sbr.rel (%p696) target = $region84
        $region83: #{run.1} parent=11 // pred_region
          %s700 = ssub.s32 512, 512
          %701 = vsyncadd [#allocation23], %s700
          %s702 = sshll.u32 [#allocation24], 4
          %s703 = int_to_ptr.vmem [resolvable:$true] %s702
          %708 = dma.hbm_to_vmem [thread:$0]  %s18, 512, %s703, [#allocation23], 64, 64, 4
        $region84: #{run.1} parent=11 // pred_fallthru
          _
        // Predicated region
        $region85: #{run.1} parent=11 // pred_check
          %p709 = pneg %p461
        $region86: #{run.1} parent=11 // pred_check_branch
          %711 = sbr.rel (%p709) target = $region88
        $region87: #{run.1} parent=11 // pred_region
          %s713 = ssub.s32 16, 16
          %714 = vsyncadd [#allocation26], %s713
          %s716 = sshll.u32 [#allocation25], 4
          %s717 = int_to_ptr.vmem [resolvable:$true] %s716
          %719 = dma.hbm_to_vmem [thread:$0]  %s19, 16, %s717, [#allocation26]
        $region88: #{run.1} parent=11 // pred_fallthru
          _
        // Predicated region
        $region89: #{run.1} parent=11 // pred_check
          %p720 = pneg %p482
        $region90: #{run.1} parent=11 // pred_check_branch
          %722 = sbr.rel (%p720) target = $region92
        $region91: #{run.1} parent=11 // pred_region
          %s724 = ssub.s32 512, 512
          %725 = vsyncadd [#allocation26], %s724
          %s726 = sshll.u32 [#allocation27], 4
          %s727 = int_to_ptr.vmem [resolvable:$true] %s726
          %732 = dma.hbm_to_vmem [thread:$0]  %s20, 512, %s727, [#allocation26], 64, 64, 4
        $region92: #{run.1} parent=11 // pred_fallthru
          _
      $region12: #{run.1} parent=5 // pred_fallthru
        _
      %p733 = scmp.lt.s32.totalorder %s36, 2
      // Predicated region
      $region93: #{run.1} parent=5 // pred_check
        %p734 = pneg %p733
      $region94: #{run.1} parent=5 // pred_check_branch
        %736 = sbr.rel (%p734) target = $region96
      $region95: #{run.1} parent=5 // pred_region
        // Predicated region
        $region97: #{run.1} parent=95 // pred_check
          %p737 = pneg %p77
        $region98: #{run.1} parent=95 // pred_check_branch
          %739 = sbr.rel (%p737) target = $region100
        $region99: #{run.1} parent=95 // pred_region
          %p740 = scmp.lt.s32.totalorder %s36, 1
          %s741 = scalar_select %p740, %s36, 1
          %s742 = smul.addr %s741, 2
          %s743 = smul.addr %s742, 8
          %s744 = scalar_lea.vmem %s1, %s743
        $region100: #{run.1} parent=95 // pred_fallthru
          _
      $region96: #{run.1} parent=5 // pred_fallthru
        _
      %p745 = scmp.le.s32.totalorder 1, %s36
      %p746 = scmp.lt.s32.totalorder %s36, 3
      %p747 = pnand %p745, %p746
      %p748 = pneg %p747
      // Predicated region
      $region101: #{run.1} parent=5 // pred_check
        _
      $region102: #{run.1} parent=5 // pred_check_branch
        %750 = sbr.rel (%p747) target = $region104
      $region103: #{run.1} parent=5 // pred_region
        %s751 = ssub.s32 %s36, 1
        // Predicated region
        $region105: #{run.1} parent=103 // pred_check
          %p752 = pneg %p57
        $region106: #{run.1} parent=103 // pred_check_branch
          %754 = sbr.rel (%p752) target = $region108
        $region107: #{run.1} parent=103 // pred_region
          %755 = dma.done [#allocation5], 64
        $region108: #{run.1} parent=103 // pred_fallthru
          _
        // Predicated region
        $region109: #{run.1} parent=103 // pred_check
          %p756 = pneg %p125
        $region110: #{run.1} parent=103 // pred_check_branch
          %758 = sbr.rel (%p756) target = $region112
        $region111: #{run.1} parent=103 // pred_region
          %759 = dma.done [#allocation4], 128
        $region112: #{run.1} parent=103 // pred_fallthru
          _
        // Predicated region
        $region113: #{run.1} parent=103 // pred_check
          %p760 = pneg %p167
        $region114: #{run.1} parent=103 // pred_check_branch
          %762 = sbr.rel (%p760) target = $region116
        $region115: #{run.1} parent=103 // pred_region
          %763 = dma.done [#allocation8], 16
        $region116: #{run.1} parent=103 // pred_fallthru
          _
        // Predicated region
        $region117: #{run.1} parent=103 // pred_check
          %p764 = pneg %p209
        $region118: #{run.1} parent=103 // pred_check_branch
          %766 = sbr.rel (%p764) target = $region120
        $region119: #{run.1} parent=103 // pred_region
          %767 = dma.done [#allocation8], 16
        $region120: #{run.1} parent=103 // pred_fallthru
          _
        // Predicated region
        $region121: #{run.1} parent=103 // pred_check
          %p768 = pneg %p230
        $region122: #{run.1} parent=103 // pred_check_branch
          %770 = sbr.rel (%p768) target = $region124
        $region123: #{run.1} parent=103 // pred_region
          %771 = dma.done [#allocation11], 1024
        $region124: #{run.1} parent=103 // pred_fallthru
          _
        // Predicated region
        $region125: #{run.1} parent=103 // pred_check
          %p772 = pneg %p251
        $region126: #{run.1} parent=103 // pred_check_branch
          %774 = sbr.rel (%p772) target = $region128
        $region127: #{run.1} parent=103 // pred_region
          %775 = dma.done [#allocation11], 32
        $region128: #{run.1} parent=103 // pred_fallthru
          _
        // Predicated region
        $region129: #{run.1} parent=103 // pred_check
          %p776 = pneg %p272
        $region130: #{run.1} parent=103 // pred_check_branch
          %778 = sbr.rel (%p776) target = $region132
        $region131: #{run.1} parent=103 // pred_region
          %779 = dma.done [#allocation14], 32
        $region132: #{run.1} parent=103 // pred_fallthru
          _
        // Predicated region
        $region133: #{run.1} parent=103 // pred_check
          %p780 = pneg %p293
        $region134: #{run.1} parent=103 // pred_check_branch
          %782 = sbr.rel (%p780) target = $region136
        $region135: #{run.1} parent=103 // pred_region
          %783 = dma.done [#allocation14], 32
        $region136: #{run.1} parent=103 // pred_fallthru
          _
        // Predicated region
        $region137: #{run.1} parent=103 // pred_check
          %p784 = pneg %p314
        $region138: #{run.1} parent=103 // pred_check_branch
          %786 = sbr.rel (%p784) target = $region140
        $region139: #{run.1} parent=103 // pred_region
          %787 = dma.done [#allocation17], 128
        $region140: #{run.1} parent=103 // pred_fallthru
          _
        // Predicated region
        $region141: #{run.1} parent=103 // pred_check
          %p788 = pneg %p335
        $region142: #{run.1} parent=103 // pred_check_branch
          %790 = sbr.rel (%p788) target = $region144
        $region143: #{run.1} parent=103 // pred_region
          %791 = dma.done [#allocation17], 32
        $region144: #{run.1} parent=103 // pred_fallthru
          _
        // Predicated region
        $region145: #{run.1} parent=103 // pred_check
          %p792 = pneg %p356
        $region146: #{run.1} parent=103 // pred_check_branch
          %794 = sbr.rel (%p792) target = $region148
        $region147: #{run.1} parent=103 // pred_region
          %795 = dma.done [#allocation20], 32
        $region148: #{run.1} parent=103 // pred_fallthru
          _
        // Predicated region
        $region149: #{run.1} parent=103 // pred_check
          %p796 = pneg %p377
        $region150: #{run.1} parent=103 // pred_check_branch
          %798 = sbr.rel (%p796) target = $region152
        $region151: #{run.1} parent=103 // pred_region
          %799 = dma.done [#allocation20], 32
        $region152: #{run.1} parent=103 // pred_fallthru
          _
        // Predicated region
        $region153: #{run.1} parent=103 // pred_check
          %p800 = pneg %p419
        $region154: #{run.1} parent=103 // pred_check_branch
          %802 = sbr.rel (%p800) target = $region156
        $region155: #{run.1} parent=103 // pred_region
          %803 = dma.done [#allocation23], 32
        $region156: #{run.1} parent=103 // pred_fallthru
          _
        // Predicated region
        $region157: #{run.1} parent=103 // pred_check
          %p804 = pneg %p440
        $region158: #{run.1} parent=103 // pred_check_branch
          %806 = sbr.rel (%p804) target = $region160
        $region159: #{run.1} parent=103 // pred_region
          %807 = dma.done [#allocation23], 512
        $region160: #{run.1} parent=103 // pred_fallthru
          _
        // Predicated region
        $region161: #{run.1} parent=103 // pred_check
          %p808 = pneg %p461
        $region162: #{run.1} parent=103 // pred_check_branch
          %810 = sbr.rel (%p808) target = $region164
        $region163: #{run.1} parent=103 // pred_region
          %811 = dma.done [#allocation26], 16
        $region164: #{run.1} parent=103 // pred_fallthru
          _
        // Predicated region
        $region165: #{run.1} parent=103 // pred_check
          %p812 = pneg %p482
        $region166: #{run.1} parent=103 // pred_check_branch
          %814 = sbr.rel (%p812) target = $region168
        $region167: #{run.1} parent=103 // pred_region
          %815 = dma.done [#allocation26], 512
        $region168: #{run.1} parent=103 // pred_fallthru
          _
        %816 = sfence
        %p817 = pneg %p57
        %p818 = pneg %p54
        %p819 = scmp.lt.s32.totalorder %s41, 1
        %s820 = scalar_select %p819, %s41, 1
        %s821 = smul.addr %s820, 2
        %s822 = smul.addr %s821, 8
        %s823 = scalar_lea.vmem %s1, %s822
        %p824 = pneg %p83
        %p825 = pneg %p80
        %p826 = pneg %p104
        %p827 = pneg %p101
        %p828 = pneg %p125
        %p829 = pneg %p122
        %p830 = pneg %p146
        %p831 = pneg %p143
        %p832 = pneg %p167
        %p833 = pneg %p164
        %p834 = pneg %p188
        %p835 = pneg %p185
        %p836 = pneg %p209
        %p837 = pneg %p206
        %p838 = pneg %p230
        %p839 = pneg %p227
        %p840 = pneg %p251
        %p841 = pneg %p248
        %p842 = pneg %p272
        %p843 = pneg %p269
        %p844 = pneg %p293
        %p845 = pneg %p290
        %p846 = pneg %p314
        %p847 = pneg %p311
        %p848 = pneg %p335
        %p849 = pneg %p332
        %p850 = pneg %p356
        %p851 = pneg %p353
        %p852 = pneg %p377
        %p853 = pneg %p374
        %p854 = pneg %p398
        %p855 = pneg %p395
        %p856 = pneg %p419
        %p857 = pneg %p416
        %p858 = pneg %p440
        %p859 = pneg %p437
        %p860 = pneg %p461
        %p861 = pneg %p458
        %p862 = pneg %p482
        %p863 = pneg %p479
        %p864 = pneg %p508
        %p865 = pneg %p505
        %p866 = scmp.lt.s32.totalorder %s41, 1
        %s867 = scalar_select %p866, %s41, 1
        %s868 = smul.addr %s867, 4
        %s869 = smul.addr %s868, 8
        %s870 = scalar_lea.vmem %s21, %s869
        %p871 = scmp.lt.s32.totalorder %s41, 1
        %s872 = scalar_select %p871, %s41, 1
        %s873 = smul.addr %s872, 2
        %s874 = smul.addr %s873, 8
        %s875 = scalar_lea.vmem %s1, %s874
        %p876 = scmp.lt.s32.totalorder %s41, 1
        %s877 = scalar_select %p876, %s41, 1
        %s878 = smul.addr %s877, 4
        %s879 = smul.addr %s878, 8
        %s880 = scalar_lea.vmem %s21, %s879
        %v882 = vld [vmem:[%s875] sm:$0xff]
        %v883 = vld [vmem:[%s875 + $0x8] sm:$0x7f]
        %v884 = vpack.c.bf16 %v883, %v882
        %v885 = vld [vmem:[%s2] sm:$0xf]
        %v886 = vld [vmem:[%s2 + $0x4] sm:$0xf]
        %v887 = vld [vmem:[#allocation6] sm:$0xf]
        %v888 = vld [vmem:[#allocation6 + $0x4] sm:$0xf]
        %v890 = vshrl.u32 %v884, 16
        %v892 = vshll.u32 %v884, 16
        %v894 = vrot.slane %v892, 1
        %v895 = vor.u32 %v890, %v894
        %v898 = vunpack.c.l.b16 %v887
        %v899 = vunpack.c.l.b16 %v888
        %v900 = vpack.c.b16 %v899, %v898
        %vm902 = vcmask 130048
        %v904 = vsel %vm902, %v895, 0
        %906 = vmatprep.subr.bf16.mxu0 0
        %907 = vmatpush1.bf16.msra.mxu0 %v900
        %908 = vmatprep.subr.bf16.mxu0 0
        %909 = vmatpush1.bf16.msra.mxu0 0
        %910 = vmatprep.subr.bf16.mxu0 0
        %911 = vmatpush1.bf16.msra.mxu0 0
        %912 = vmatprep.subr.bf16.mxu0 0
        %913 = vmatpush1.bf16.msra.mxu0 0
        %914 = vmatprep.subr.bf16.mxu0 0
        %915 = vmatpush1.bf16.msra.mxu0 0
        %916 = vmatprep.subr.bf16.mxu0 0
        %917 = vmatpush1.bf16.msra.mxu0 0
        %918 = vmatprep.subr.bf16.mxu0 0
        %919 = vmatpush1.bf16.msra.mxu0 0
        %920 = vmatprep.subr.bf16.mxu0 0
        %921 = vmatpush1.bf16.msra.mxu0 0
        %922 = vmatprep.subr.bf16.mxu0 0
        %923 = vmatpush1.bf16.msra.mxu0 0
        %924 = vmatprep.subr.bf16.mxu0 0
        %925 = vmatpush1.bf16.msra.mxu0 0
        %926 = vmatprep.subr.bf16.mxu0 0
        %927 = vmatpush1.bf16.msra.mxu0 0
        %928 = vmatprep.subr.bf16.mxu0 0
        %929 = vmatpush1.bf16.msra.mxu0 0
        %930 = vmatprep.subr.bf16.mxu0 0
        %931 = vmatpush1.bf16.msra.mxu0 0
        %932 = vmatprep.subr.bf16.mxu0 0
        %933 = vmatpush1.bf16.msra.mxu0 0
        %934 = vmatprep.subr.bf16.mxu0 0
        %935 = vmatpush1.bf16.msra.mxu0 0
        %936 = vmatprep.subr.bf16.mxu0 0
        %937 = vmatpush1.bf16.msra.mxu0 0
        %938 = vmatprep.mubr.bf16.mxu0 0
        %939 = vmatmul.mubr.bf16.gmra.mrb[0].mxu0 %v904
        %v940 = vpop.f32.mrb[0].mxu0
        %v941 = vadd.f32 0.0, %v940
        %v942 = vpop.f32.mrb[0].mxu0
        %v943 = vpop.f32.mrb[0].mxu0
        %v944 = vadd.f32 0.0, %v943
        %v945 = vpop.f32.mrb[0].mxu0
        %946 = vdwg.mxu0
        %v949 = vunpack.c.l.b16 %v885
        %v950 = vunpack.c.l.b16 %v886
        %v951 = vpack.c.b16 %v950, %v949
        %v953 = vsel %vm902, %v884, 0
        %955 = vmatprep.subr.bf16.mxu0 0
        %956 = vmatpush1.bf16.msra.mxu0 %v951
        %957 = vmatprep.subr.bf16.mxu0 0
        %958 = vmatpush1.bf16.msra.mxu0 0
        %959 = vmatprep.subr.bf16.mxu0 0
        %960 = vmatpush1.bf16.msra.mxu0 0
        %961 = vmatprep.subr.bf16.mxu0 0
        %962 = vmatpush1.bf16.msra.mxu0 0
        %963 = vmatprep.subr.bf16.mxu0 0
        %964 = vmatpush1.bf16.msra.mxu0 0
        %965 = vmatprep.subr.bf16.mxu0 0
        %966 = vmatpush1.bf16.msra.mxu0 0
        %967 = vmatprep.subr.bf16.mxu0 0
        %968 = vmatpush1.bf16.msra.mxu0 0
        %969 = vmatprep.subr.bf16.mxu0 0
        %970 = vmatpush1.bf16.msra.mxu0 0
        %971 = vmatprep.subr.bf16.mxu0 0
        %972 = vmatpush1.bf16.msra.mxu0 0
        %973 = vmatprep.subr.bf16.mxu0 0
        %974 = vmatpush1.bf16.msra.mxu0 0
        %975 = vmatprep.subr.bf16.mxu0 0
        %976 = vmatpush1.bf16.msra.mxu0 0
        %977 = vmatprep.subr.bf16.mxu0 0
        %978 = vmatpush1.bf16.msra.mxu0 0
        %979 = vmatprep.subr.bf16.mxu0 0
        %980 = vmatpush1.bf16.msra.mxu0 0
        %981 = vmatprep.subr.bf16.mxu0 0
        %982 = vmatpush1.bf16.msra.mxu0 0
        %983 = vmatprep.subr.bf16.mxu0 0
        %984 = vmatpush1.bf16.msra.mxu0 0
        %985 = vmatprep.subr.bf16.mxu0 0
        %986 = vmatpush1.bf16.msra.mxu0 0
        %987 = vmatprep.mubr.bf16.mxu0 0
        %988 = vmatmul.mubr.bf16.gmra.mrb[0].mxu0 %v953
        %v989 = vpop.f32.mrb[0].mxu0
        %v990 = vadd.f32 %v941, %v989
        %v991 = vpop.f32.mrb[0].mxu0
        %v992 = vpop.f32.mrb[0].mxu0
        %v993 = vadd.f32 %v944, %v992
        %v994 = vpop.f32.mrb[0].mxu0
        %995 = vdwg.mxu0
        %v996 = vld [vmem:[%s4] sm:$0x1]
        %v997 = vld [vmem:[#allocation7] sm:$0x1]
        %vm998 = vcmask 523264
        %v999 = vsel %vm998, %v990, 0.0
        %vm1000 = vcmask 521216
        %v1001 = vsel %vm1000, %v993, 0.0
        %v1002 = vadd.f32 %v999, %v1001
        %1003 = vadd.xlane.f32.xlu0 %v1002
        %v1004 = vpop.xlane.xlu0 %1003
        %v1005 = vrot.slane %v1004, 4
        %v1006 = vadd.f32 %v1004, %v1005
        %v1007 = vrot.slane %v1006, 2
        %v1008 = vadd.f32 %v1006, %v1007
        %v1009 = vrot.slane %v1008, 1
        %v1010 = vadd.f32 %v1008, %v1009
        %s1011 = vtos %v1010
        %v1012 = vrcp.pop 896.0
        %s1013 = vtos %v1012
        %s1014 = smul.f32 %s1011, %s1013
        %v1015 = vstv %s1014
        %v1016 = vsub.f32 %v990, %v1015
        %v1017 = vsub.f32 %v993, %v1015
        %v1018 = vmul.f32 %v1016, %v1016
        %v1019 = vmul.f32 %v1017, %v1017
        %v1020 = vsel %vm998, %v1018, 0.0
        %v1021 = vsel %vm1000, %v1019, 0.0
        %v1022 = vadd.f32 %v1020, %v1021
        %1023 = vadd.xlane.f32.xlu0 %v1022
        %v1024 = vpop.xlane.xlu0 %1023
        %v1025 = vrot.slane %v1024, 4
        %v1026 = vadd.f32 %v1024, %v1025
        %v1027 = vrot.slane %v1026, 2
        %v1028 = vadd.f32 %v1026, %v1027
        %v1029 = vrot.slane %v1028, 1
        %v1030 = vadd.f32 %v1028, %v1029
        %s1031 = vtos %v1030
        %v1032 = vrcp.pop 896.0
        %s1033 = vtos %v1032
        %s1034 = smul.f32 %s1031, %s1033
        %s1035 = sadd.f32 %s1034, 1e-08
        %v1036 = vstv %s1035
        %v1037 = vrsqrt.pop %v1036
        %s1038 = vtos %v1037
        %v1039 = vstv %s1038
        %v1040 = vmul.f32 %v1016, %v1039
        %v1041 = vmul.f32 %v1017, %v1039
        %v1043 = vlaneseq
        %v1044 = vshrl.u32 %v1043, 7
        %v1045 = vsub.s32 0, %v1044
        %v1046 = vrot.slane %v996, %v1045
        %v1048 = vmul.f32 %v1040, %v1046
        %v1049 = vmul.f32 %v1041, %v1046
        %v1051 = vlaneseq
        %v1052 = vshrl.u32 %v1051, 7
        %v1053 = vsub.s32 0, %v1052
        %v1054 = vrot.slane %v997, %v1053
        %v1056 = vadd.f32 %v1048, %v1054
        %v1057 = vadd.f32 %v1049, %v1054
        %v1058 = vpack.c.bf16 %v1057, %v1056
        %v1059 = vld [vmem:[%s6] sm:$0xf]
        %v1060 = vld [vmem:[%s6 + $0x4] sm:$0xf]
        %v1061 = vld [vmem:[%s6 + $0x8] sm:$0xf]
        %v1062 = vld [vmem:[%s6 + $0xc] sm:$0xf]
        %v1063 = vld [vmem:[%s6 + $0x10] sm:$0xf]
        %v1064 = vld [vmem:[%s6 + $0x14] sm:$0xf]
        %v1065 = vld [vmem:[%s6 + $0x18] sm:$0xf]
        %v1066 = vld [vmem:[%s6 + $0x1c] sm:$0xf]
        %v1067 = vld [vmem:[#allocation9] sm:$0x1]
        %v1069 = vlaneseq
        %v1070 = vshrl.u32 %v1069, 7
        %v1071 = vsub.s32 0, %v1070
        %v1072 = vrot.slane %v1067, %v1071
        %v1082 = vunpack.c.l.b16 %v1059
        %v1083 = vunpack.c.l.b16 %v1060
        %v1084 = vunpack.c.l.b16 %v1061
        %v1085 = vunpack.c.l.b16 %v1062
        %v1086 = vunpack.c.l.b16 %v1063
        %v1087 = vunpack.c.l.b16 %v1064
        %v1088 = vunpack.c.l.b16 %v1065
        %v1089 = vunpack.c.l.b16 %v1066
        %v1090 = vpack.c.b16 %v1083, %v1082
        %v1091 = vpack.c.b16 %v1085, %v1084
        %v1092 = vpack.c.b16 %v1087, %v1086
        %v1093 = vpack.c.b16 %v1089, %v1088
        %v1099 = vsel %vm998, %v1058, 0
        %1101 = vmatprep.subr.bf16.mxu0 0
        %1102 = vmatpush1.bf16.msra.mxu0 %v1090
        %1103 = vmatprep.subr.bf16.mxu0 0
        %1104 = vmatpush1.bf16.msra.mxu0 %v1091
        %1105 = vmatprep.subr.bf16.mxu0 0
        %1106 = vmatpush1.bf16.msra.mxu0 %v1092
        %1107 = vmatprep.subr.bf16.mxu0 0
        %1108 = vmatpush1.bf16.msra.mxu0 %v1093
        %1109 = vmatprep.subr.bf16.mxu0 0
        %1110 = vmatpush1.bf16.msra.mxu0 0
        %1111 = vmatprep.subr.bf16.mxu0 0
        %1112 = vmatpush1.bf16.msra.mxu0 0
        %1113 = vmatprep.subr.bf16.mxu0 0
        %1114 = vmatpush1.bf16.msra.mxu0 0
        %1115 = vmatprep.subr.bf16.mxu0 0
        %1116 = vmatpush1.bf16.msra.mxu0 0
        %1117 = vmatprep.subr.bf16.mxu0 0
        %1118 = vmatpush1.bf16.msra.mxu0 0
        %1119 = vmatprep.subr.bf16.mxu0 0
        %1120 = vmatpush1.bf16.msra.mxu0 0
        %1121 = vmatprep.subr.bf16.mxu0 0
        %1122 = vmatpush1.bf16.msra.mxu0 0
        %1123 = vmatprep.subr.bf16.mxu0 0
        %1124 = vmatpush1.bf16.msra.mxu0 0
        %1125 = vmatprep.subr.bf16.mxu0 0
        %1126 = vmatpush1.bf16.msra.mxu0 0
        %1127 = vmatprep.subr.bf16.mxu0 0
        %1128 = vmatpush1.bf16.msra.mxu0 0
        %1129 = vmatprep.subr.bf16.mxu0 0
        %1130 = vmatpush1.bf16.msra.mxu0 0
        %1131 = vmatprep.subr.bf16.mxu0 0
        %1132 = vmatpush1.bf16.msra.mxu0 0
        %1133 = vmatprep.mubr.bf16.mxu0 0
        %1134 = vmatmul.mubr.bf16.gmra.mrb[0].mxu0 %v1099
        %v1135 = vpop.f32.mrb[0].mxu0
        %v1136 = vadd.f32 %v1072, %v1135
        %v1137 = vpop.f32.mrb[0].mxu0
        %v1138 = vpop.f32.mrb[0].mxu0
        %v1139 = vadd.f32 %v1072, %v1138
        %v1140 = vpop.f32.mrb[0].mxu0
        %1141 = vdwg.mxu0
        %s1142 = sld [smem:[#allocation3]]
        %s1143 = sld [smem:[#allocation3 + $0x1]]
        %v1144 = vpack.c.bf16 %v1139, %v1136
        %v1145 = vld [vmem:[#allocation10] sm:$0xf]
        %v1146 = vld [vmem:[#allocation10 + $0x4] sm:$0xf]
        %v1147 = vld [vmem:[#allocation10 + $0x8] sm:$0xf]
        %v1148 = vld [vmem:[#allocation10 + $0xc] sm:$0xf]
        %v1149 = vld [vmem:[#allocation10 + $0x10] sm:$0xf]
        %v1150 = vld [vmem:[#allocation10 + $0x14] sm:$0xf]
        %v1151 = vld [vmem:[#allocation10 + $0x18] sm:$0xf]
        %v1152 = vld [vmem:[#allocation10 + $0x1c] sm:$0xf]
        %v1153 = vld [vmem:[#allocation12] sm:$0x1]
        %v1155 = vlaneseq
        %v1156 = vshrl.u32 %v1155, 7
        %v1157 = vsub.s32 0, %v1156
        %v1158 = vrot.slane %v1153, %v1157
        %v1168 = vunpack.c.l.b16 %v1145
        %v1169 = vunpack.c.l.b16 %v1146
        %v1170 = vunpack.c.l.b16 %v1147
        %v1171 = vunpack.c.l.b16 %v1148
        %v1172 = vunpack.c.l.b16 %v1149
        %v1173 = vunpack.c.l.b16 %v1150
        %v1174 = vunpack.c.l.b16 %v1151
        %v1175 = vunpack.c.l.b16 %v1152
        %v1176 = vpack.c.b16 %v1169, %v1168
        %v1177 = vpack.c.b16 %v1171, %v1170
        %v1178 = vpack.c.b16 %v1173, %v1172
        %v1179 = vpack.c.b16 %v1175, %v1174
        %v1185 = vsel %vm998, %v1144, 0
        %1187 = vmatprep.subr.bf16.mxu0 0
        %1188 = vmatpush1.bf16.msra.mxu0 %v1176
        %1189 = vmatprep.subr.bf16.mxu0 0
        %1190 = vmatpush1.bf16.msra.mxu0 %v1177
        %1191 = vmatprep.subr.bf16.mxu0 0
        %1192 = vmatpush1.bf16.msra.mxu0 %v1178
        %1193 = vmatprep.subr.bf16.mxu0 0
        %1194 = vmatpush1.bf16.msra.mxu0 %v1179
        %1195 = vmatprep.subr.bf16.mxu0 0
        %1196 = vmatpush1.bf16.msra.mxu0 0
        %1197 = vmatprep.subr.bf16.mxu0 0
        %1198 = vmatpush1.bf16.msra.mxu0 0
        %1199 = vmatprep.subr.bf16.mxu0 0
        %1200 = vmatpush1.bf16.msra.mxu0 0
        %1201 = vmatprep.subr.bf16.mxu0 0
        %1202 = vmatpush1.bf16.msra.mxu0 0
        %1203 = vmatprep.subr.bf16.mxu0 0
        %1204 = vmatpush1.bf16.msra.mxu0 0
        %1205 = vmatprep.subr.bf16.mxu0 0
        %1206 = vmatpush1.bf16.msra.mxu0 0
        %1207 = vmatprep.subr.bf16.mxu0 0
        %1208 = vmatpush1.bf16.msra.mxu0 0
        %1209 = vmatprep.subr.bf16.mxu0 0
        %1210 = vmatpush1.bf16.msra.mxu0 0
        %1211 = vmatprep.subr.bf16.mxu0 0
        %1212 = vmatpush1.bf16.msra.mxu0 0
        %1213 = vmatprep.subr.bf16.mxu0 0
        %1214 = vmatpush1.bf16.msra.mxu0 0
        %1215 = vmatprep.subr.bf16.mxu0 0
        %1216 = vmatpush1.bf16.msra.mxu0 0
        %1217 = vmatprep.subr.bf16.mxu0 0
        %1218 = vmatpush1.bf16.msra.mxu0 0
        %1219 = vmatprep.mubr.bf16.mxu0 0
        %1220 = vmatmul.mubr.bf16.gmra.mrb[0].mxu0 %v1185
        %v1221 = vpop.f32.mrb[0].mxu0
        %v1222 = vadd.f32 %v1158, %v1221
        %v1223 = vpop.f32.mrb[0].mxu0
        %v1224 = vpop.f32.mrb[0].mxu0
        %v1225 = vadd.f32 %v1158, %v1224
        %v1226 = vpop.f32.mrb[0].mxu0
        %1227 = vdwg.mxu0
        %vm1228 = vcmp.ge.f32.partialorder %v1222, 0.0
        %vm1229 = vcmp.ge.f32.partialorder %v1225, 0.0
        %v1230 = vstv %s1142
        %v1231 = vmul.f32 %v1230, %v1222
        %v1232 = vmul.f32 %v1230, %v1225
        %v1233 = vsel %vm1228, %v1222, %v1231
        %v1234 = vsel %vm1229, %v1225, %v1232
        %v1235 = vld [vmem:[#allocation13] sm:$0x1]
        %v1236 = vld [vmem:[#allocation15] sm:$0x1]
        %vm1237 = vcmask 1045504
        %v1238 = vsel %vm1237, %v1234, 0.0
        %v1239 = vadd.f32 %v1233, %v1238
        %1240 = vadd.xlane.f32.xlu0 %v1239
        %v1241 = vpop.xlane.xlu0 %1240
        %v1242 = vrot.slane %v1241, 4
        %v1243 = vadd.f32 %v1241, %v1242
        %v1244 = vrot.slane %v1243, 2
        %v1245 = vadd.f32 %v1243, %v1244
        %v1246 = vrot.slane %v1245, 1
        %v1247 = vadd.f32 %v1245, %v1246
        %s1248 = vtos %v1247
        %v1249 = vrcp.pop 1792.0
        %s1250 = vtos %v1249
        %s1251 = smul.f32 %s1248, %s1250
        %v1252 = vstv %s1251
        %v1253 = vsub.f32 %v1233, %v1252
        %v1254 = vsub.f32 %v1234, %v1252
        %v1255 = vmul.f32 %v1253, %v1253
        %v1256 = vmul.f32 %v1254, %v1254
        %v1257 = vsel %vm1237, %v1256, 0.0
        %v1258 = vadd.f32 %v1255, %v1257
        %1259 = vadd.xlane.f32.xlu0 %v1258
        %v1260 = vpop.xlane.xlu0 %1259
        %v1261 = vrot.slane %v1260, 4
        %v1262 = vadd.f32 %v1260, %v1261
        %v1263 = vrot.slane %v1262, 2
        %v1264 = vadd.f32 %v1262, %v1263
        %v1265 = vrot.slane %v1264, 1
        %v1266 = vadd.f32 %v1264, %v1265
        %s1267 = vtos %v1266
        %v1268 = vrcp.pop 1792.0
        %s1269 = vtos %v1268
        %s1270 = smul.f32 %s1267, %s1269
        %s1271 = sadd.f32 %s1270, 1e-08
        %v1272 = vstv %s1271
        %v1273 = vrsqrt.pop %v1272
        %s1274 = vtos %v1273
        %v1275 = vstv %s1274
        %v1276 = vmul.f32 %v1253, %v1275
        %v1277 = vmul.f32 %v1254, %v1275
        %v1279 = vlaneseq
        %v1280 = vshrl.u32 %v1279, 7
        %v1281 = vsub.s32 0, %v1280
        %v1282 = vrot.slane %v1235, %v1281
        %v1284 = vmul.f32 %v1276, %v1282
        %v1285 = vmul.f32 %v1277, %v1282
        %v1287 = vlaneseq
        %v1288 = vshrl.u32 %v1287, 7
        %v1289 = vsub.s32 0, %v1288
        %v1290 = vrot.slane %v1236, %v1289
        %v1292 = vadd.f32 %v1284, %v1290
        %v1293 = vadd.f32 %v1285, %v1290
        %1294 = vst [vmem:[#allocation2] sm:$0xff] 0.0
        %1295 = vst [vmem:[#allocation2 + $0x8] sm:$0xff] 0.0
        %1296 = vst [vmem:[#allocation2 + $0x10] sm:$0x3] 0.0
        %1297 = vst [vmem:[#allocation2 + $0x1] sm:$0xff] %v1292
        %1298 = vst [vmem:[#allocation2 + $0x9] sm:$0x3f] %v1293
        %v1299 = vld [vmem:[#allocation16] sm:$0x7]
        %v1300 = vld [vmem:[#allocation18] sm:$0x1]
        %v1302 = vlaneseq
        %v1303 = vshrl.u32 %v1302, 7
        %v1304 = vsub.s32 0, %v1303
        %v1305 = vrot.slane %v1300, %v1304
        %v1307 = vadd.f32 %v1305, 0.0
        %v1308 = vld [vmem:[#allocation2] sm:$0xff]
        %v1309 = vld [vmem:[#allocation2 + $0x8] sm:$0x3f]
        %v1310 = vlaneseq
        %v1311 = vshrl.u32 %v1310, 7
        %v1312 = vsub.s32 0, %v1311
        %v1313 = vrot.slane %v1299, %v1312
        %v1314 = vmul.f32 %v1308, %v1313
        %v1315 = vmul.f32 %v1309, %v1313
        %v1316 = vadd.f32 %v1307, %v1314
        %v1317 = vadd.f32 %v1307, %v1315
        %v1318 = vld [vmem:[#allocation2 + $0x1] sm:$0xff]
        %v1319 = vld [vmem:[#allocation2 + $0x9] sm:$0x3f]
        %v1320 = vlaneseq
        %v1321 = vshrl.u32 %v1320, 7
        %v1322 = vsub.s32 1, %v1321
        %v1323 = vrot.slane %v1299, %v1322
        %v1324 = vmul.f32 %v1318, %v1323
        %v1325 = vmul.f32 %v1319, %v1323
        %v1326 = vadd.f32 %v1316, %v1324
        %v1327 = vadd.f32 %v1317, %v1325
        %v1328 = vld [vmem:[#allocation2 + $0x2] sm:$0xff]
        %v1329 = vld [vmem:[#allocation2 + $0xa] sm:$0x3f]
        %v1330 = vlaneseq
        %v1331 = vshrl.u32 %v1330, 7
        %v1332 = vsub.s32 2, %v1331
        %v1333 = vrot.slane %v1299, %v1332
        %v1334 = vmul.f32 %v1328, %v1333
        %v1335 = vmul.f32 %v1329, %v1333
        %v1336 = vadd.f32 %v1326, %v1334
        %v1337 = vadd.f32 %v1327, %v1335
        %vm1338 = vcmp.ge.f32.partialorder %v1336, 0.0
        %vm1339 = vcmp.ge.f32.partialorder %v1337, 0.0
        %v1340 = vstv %s1143
        %v1341 = vmul.f32 %v1340, %v1336
        %v1342 = vmul.f32 %v1340, %v1337
        %v1343 = vsel %vm1338, %v1336, %v1341
        %v1344 = vsel %vm1339, %v1337, %v1342
        %v1345 = vld [vmem:[#allocation19] sm:$0x1]
        %v1346 = vld [vmem:[#allocation21] sm:$0x1]
        %v1347 = vsel %vm1237, %v1344, 0.0
        %v1348 = vadd.f32 %v1343, %v1347
        %1349 = vadd.xlane.f32.xlu0 %v1348
        %v1350 = vpop.xlane.xlu0 %1349
        %v1351 = vrot.slane %v1350, 4
        %v1352 = vadd.f32 %v1350, %v1351
        %v1353 = vrot.slane %v1352, 2
        %v1354 = vadd.f32 %v1352, %v1353
        %v1355 = vrot.slane %v1354, 1
        %v1356 = vadd.f32 %v1354, %v1355
        %s1357 = vtos %v1356
        %v1358 = vrcp.pop 1792.0
        %s1359 = vtos %v1358
        %s1360 = smul.f32 %s1357, %s1359
        %v1361 = vstv %s1360
        %v1362 = vsub.f32 %v1343, %v1361
        %v1363 = vsub.f32 %v1344, %v1361
        %v1364 = vmul.f32 %v1362, %v1362
        %v1365 = vmul.f32 %v1363, %v1363
        %v1366 = vsel %vm1237, %v1365, 0.0
        %v1367 = vadd.f32 %v1364, %v1366
        %1368 = vadd.xlane.f32.xlu0 %v1367
        %v1369 = vpop.xlane.xlu0 %1368
        %v1370 = vrot.slane %v1369, 4
        %v1371 = vadd.f32 %v1369, %v1370
        %v1372 = vrot.slane %v1371, 2
        %v1373 = vadd.f32 %v1371, %v1372
        %v1374 = vrot.slane %v1373, 1
        %v1375 = vadd.f32 %v1373, %v1374
        %s1376 = vtos %v1375
        %v1377 = vrcp.pop 1792.0
        %s1378 = vtos %v1377
        %s1379 = smul.f32 %s1376, %s1378
        %s1380 = sadd.f32 %s1379, 1e-08
        %v1381 = vstv %s1380
        %v1382 = vrsqrt.pop %v1381
        %s1383 = vtos %v1382
        %v1384 = vstv %s1383
        %v1385 = vmul.f32 %v1362, %v1384
        %v1386 = vmul.f32 %v1363, %v1384
        %v1388 = vlaneseq
        %v1389 = vshrl.u32 %v1388, 7
        %v1390 = vsub.s32 0, %v1389
        %v1391 = vrot.slane %v1345, %v1390
        %v1393 = vmul.f32 %v1385, %v1391
        %v1394 = vmul.f32 %v1386, %v1391
        %v1396 = vlaneseq
        %v1397 = vshrl.u32 %v1396, 7
        %v1398 = vsub.s32 0, %v1397
        %v1399 = vrot.slane %v1346, %v1398
        %v1401 = vadd.f32 %v1393, %v1399
        %v1402 = vadd.f32 %v1394, %v1399
        %v1403 = vpack.c.bf16 %v1402, %v1401
        %v1404 = vld [vmem:[%s16] sm:$0xf]
        %v1405 = vld [vmem:[%s16 + $0x4] sm:$0xf]
        %v1406 = vld [vmem:[%s16 + $0x8] sm:$0xf]
        %v1407 = vld [vmem:[%s16 + $0xc] sm:$0xf]
        %v1408 = vld [vmem:[%s16 + $0x10] sm:$0xf]
        %v1409 = vld [vmem:[%s16 + $0x14] sm:$0xf]
        %v1410 = vld [vmem:[%s16 + $0x18] sm:$0xf]
        %v1411 = vld [vmem:[%s16 + $0x1c] sm:$0xf]
        %v1412 = vld [vmem:[%s16 + $0x20] sm:$0xf]
        %v1413 = vld [vmem:[%s16 + $0x24] sm:$0xf]
        %v1414 = vld [vmem:[%s16 + $0x28] sm:$0xf]
        %v1415 = vld [vmem:[%s16 + $0x2c] sm:$0xf]
        %v1416 = vld [vmem:[%s16 + $0x30] sm:$0xf]
        %v1417 = vld [vmem:[%s16 + $0x34] sm:$0xf]
        %v1418 = vld [vmem:[%s16 + $0x38] sm:$0xf]
        %v1419 = vld [vmem:[%s16 + $0x3c] sm:$0xf]
        %v1436 = vunpack.c.l.b16 %v1404
        %v1437 = vunpack.c.l.b16 %v1405
        %v1438 = vunpack.c.l.b16 %v1406
        %v1439 = vunpack.c.l.b16 %v1407
        %v1440 = vunpack.c.l.b16 %v1408
        %v1441 = vunpack.c.l.b16 %v1409
        %v1442 = vunpack.c.l.b16 %v1410
        %v1443 = vunpack.c.l.b16 %v1411
        %v1444 = vunpack.c.l.b16 %v1412
        %v1445 = vunpack.c.l.b16 %v1413
        %v1446 = vunpack.c.l.b16 %v1414
        %v1447 = vunpack.c.l.b16 %v1415
        %v1448 = vunpack.c.l.b16 %v1416
        %v1449 = vunpack.c.l.b16 %v1417
        %v1450 = vunpack.c.l.b16 %v1418
        %v1451 = vunpack.c.l.b16 %v1419
        %v1452 = vpack.c.b16 %v1437, %v1436
        %v1453 = vpack.c.b16 %v1439, %v1438
        %v1454 = vpack.c.b16 %v1441, %v1440
        %v1455 = vpack.c.b16 %v1443, %v1442
        %v1456 = vpack.c.b16 %v1445, %v1444
        %v1457 = vpack.c.b16 %v1447, %v1446
        %v1458 = vpack.c.b16 %v1449, %v1448
        %v1459 = vpack.c.b16 %v1451, %v1450
        %1468 = vmatprep.subr.bf16.mxu0 0
        %1469 = vmatpush1.bf16.msra.mxu0 %v1452
        %1470 = vmatprep.subr.bf16.mxu0 0
        %1471 = vmatpush1.bf16.msra.mxu0 %v1453
        %1472 = vmatprep.subr.bf16.mxu0 0
        %1473 = vmatpush1.bf16.msra.mxu0 %v1454
        %1474 = vmatprep.subr.bf16.mxu0 0
        %1475 = vmatpush1.bf16.msra.mxu0 %v1455
        %1476 = vmatprep.subr.bf16.mxu0 0
        %1477 = vmatpush1.bf16.msra.mxu0 %v1456
        %1478 = vmatprep.subr.bf16.mxu0 0
        %1479 = vmatpush1.bf16.msra.mxu0 %v1457
        %1480 = vmatprep.subr.bf16.mxu0 0
        %1481 = vmatpush1.bf16.msra.mxu0 %v1458
        %1482 = vmatprep.subr.bf16.mxu0 0
        %1483 = vmatpush1.bf16.msra.mxu0 %v1459
        %1484 = vmatprep.subr.bf16.mxu0 0
        %1485 = vmatpush1.bf16.msra.mxu0 0
        %1486 = vmatprep.subr.bf16.mxu0 0
        %1487 = vmatpush1.bf16.msra.mxu0 0
        %1488 = vmatprep.subr.bf16.mxu0 0
        %1489 = vmatpush1.bf16.msra.mxu0 0
        %1490 = vmatprep.subr.bf16.mxu0 0
        %1491 = vmatpush1.bf16.msra.mxu0 0
        %1492 = vmatprep.subr.bf16.mxu0 0
        %1493 = vmatpush1.bf16.msra.mxu0 0
        %1494 = vmatprep.subr.bf16.mxu0 0
        %1495 = vmatpush1.bf16.msra.mxu0 0
        %1496 = vmatprep.subr.bf16.mxu0 0
        %1497 = vmatpush1.bf16.msra.mxu0 0
        %1498 = vmatprep.subr.bf16.mxu0 0
        %1499 = vmatpush1.bf16.msra.mxu0 0
        %1500 = vmatprep.mubr.bf16.mxu0 0
        %1501 = vmatmul.mubr.bf16.gmra.mrb[0].mxu0 %v1403
        %v1502 = vpop.f32.mrb[0].mxu0
        %v1503 = vadd.f32 0.0, %v1502
        %v1504 = vpop.f32.mrb[0].mxu0
        %v1505 = vpop.f32.mrb[0].mxu0
        %v1506 = vadd.f32 0.0, %v1505
        %v1507 = vpop.f32.mrb[0].mxu0
        %1508 = vdwg.mxu0
        %v1509 = vadd.f32 %v1136, %v1503
        %v1510 = vadd.f32 %v1139, %v1506
        %v1511 = vld [vmem:[#allocation22] sm:$0x1]
        %v1513 = vlaneseq
        %v1514 = vshrl.u32 %v1513, 7
        %v1515 = vsub.s32 0, %v1514
        %v1516 = vrot.slane %v1511, %v1515
        %v1518 = vadd.f32 %v1509, %v1516
        %v1519 = vadd.f32 %v1510, %v1516
        %s1520 = sld [smem:[#allocation3 + $0x80]]
        %s1521 = sld [smem:[#allocation3 + $0x81]]
        %v1522 = vpack.c.bf16 %v1519, %v1518
        %s1523 = scalar_lea.vmem [#allocation10], 32
        %v1524 = vld [vmem:[%s1523] sm:$0xf]
        %v1525 = vld [vmem:[%s1523 + $0x4] sm:$0xf]
        %v1526 = vld [vmem:[%s1523 + $0x8] sm:$0xf]
        %v1527 = vld [vmem:[%s1523 + $0xc] sm:$0xf]
        %v1528 = vld [vmem:[%s1523 + $0x10] sm:$0xf]
        %v1529 = vld [vmem:[%s1523 + $0x14] sm:$0xf]
        %v1530 = vld [vmem:[%s1523 + $0x18] sm:$0xf]
        %v1531 = vld [vmem:[%s1523 + $0x1c] sm:$0xf]
        %s1532 = scalar_lea.vmem [#allocation12], 1
        %v1533 = vld [vmem:[%s1532] sm:$0x1]
        %v1535 = vlaneseq
        %v1536 = vshrl.u32 %v1535, 7
        %v1537 = vsub.s32 0, %v1536
        %v1538 = vrot.slane %v1533, %v1537
        %v1548 = vunpack.c.l.b16 %v1524
        %v1549 = vunpack.c.l.b16 %v1525
        %v1550 = vunpack.c.l.b16 %v1526
        %v1551 = vunpack.c.l.b16 %v1527
        %v1552 = vunpack.c.l.b16 %v1528
        %v1553 = vunpack.c.l.b16 %v1529
        %v1554 = vunpack.c.l.b16 %v1530
        %v1555 = vunpack.c.l.b16 %v1531
        %v1556 = vpack.c.b16 %v1549, %v1548
        %v1557 = vpack.c.b16 %v1551, %v1550
        %v1558 = vpack.c.b16 %v1553, %v1552
        %v1559 = vpack.c.b16 %v1555, %v1554
        %v1565 = vsel %vm998, %v1522, 0
        %1567 = vmatprep.subr.bf16.mxu0 0
        %1568 = vmatpush1.bf16.msra.mxu0 %v1556
        %1569 = vmatprep.subr.bf16.mxu0 0
        %1570 = vmatpush1.bf16.msra.mxu0 %v1557
        %1571 = vmatprep.subr.bf16.mxu0 0
        %1572 = vmatpush1.bf16.msra.mxu0 %v1558
        %1573 = vmatprep.subr.bf16.mxu0 0
        %1574 = vmatpush1.bf16.msra.mxu0 %v1559
        %1575 = vmatprep.subr.bf16.mxu0 0
        %1576 = vmatpush1.bf16.msra.mxu0 0
        %1577 = vmatprep.subr.bf16.mxu0 0
        %1578 = vmatpush1.bf16.msra.mxu0 0
        %1579 = vmatprep.subr.bf16.mxu0 0
        %1580 = vmatpush1.bf16.msra.mxu0 0
        %1581 = vmatprep.subr.bf16.mxu0 0
        %1582 = vmatpush1.bf16.msra.mxu0 0
        %1583 = vmatprep.subr.bf16.mxu0 0
        %1584 = vmatpush1.bf16.msra.mxu0 0
        %1585 = vmatprep.subr.bf16.mxu0 0
        %1586 = vmatpush1.bf16.msra.mxu0 0
        %1587 = vmatprep.subr.bf16.mxu0 0
        %1588 = vmatpush1.bf16.msra.mxu0 0
        %1589 = vmatprep.subr.bf16.mxu0 0
        %1590 = vmatpush1.bf16.msra.mxu0 0
        %1591 = vmatprep.subr.bf16.mxu0 0
        %1592 = vmatpush1.bf16.msra.mxu0 0
        %1593 = vmatprep.subr.bf16.mxu0 0
        %1594 = vmatpush1.bf16.msra.mxu0 0
        %1595 = vmatprep.subr.bf16.mxu0 0
        %1596 = vmatpush1.bf16.msra.mxu0 0
        %1597 = vmatprep.subr.bf16.mxu0 0
        %1598 = vmatpush1.bf16.msra.mxu0 0
        %1599 = vmatprep.mubr.bf16.mxu0 0
        %1600 = vmatmul.mubr.bf16.gmra.mrb[0].mxu0 %v1565
        %v1601 = vpop.f32.mrb[0].mxu0
        %v1602 = vadd.f32 %v1538, %v1601
        %v1603 = vpop.f32.mrb[0].mxu0
        %v1604 = vpop.f32.mrb[0].mxu0
        %v1605 = vadd.f32 %v1538, %v1604
        %v1606 = vpop.f32.mrb[0].mxu0
        %1607 = vdwg.mxu0
        %vm1608 = vcmp.ge.f32.partialorder %v1602, 0.0
        %vm1609 = vcmp.ge.f32.partialorder %v1605, 0.0
        %v1610 = vstv %s1520
        %v1611 = vmul.f32 %v1610, %v1602
        %v1612 = vmul.f32 %v1610, %v1605
        %v1613 = vsel %vm1608, %v1602, %v1611
        %v1614 = vsel %vm1609, %v1605, %v1612
        %s1615 = scalar_lea.vmem [#allocation13], 1
        %v1616 = vld [vmem:[%s1615] sm:$0x1]
        %s1617 = scalar_lea.vmem [#allocation15], 1
        %v1618 = vld [vmem:[%s1617] sm:$0x1]
        %v1619 = vsel %vm1237, %v1614, 0.0
        %v1620 = vadd.f32 %v1613, %v1619
        %1621 = vadd.xlane.f32.xlu0 %v1620
        %v1622 = vpop.xlane.xlu0 %1621
        %v1623 = vrot.slane %v1622, 4
        %v1624 = vadd.f32 %v1622, %v1623
        %v1625 = vrot.slane %v1624, 2
        %v1626 = vadd.f32 %v1624, %v1625
        %v1627 = vrot.slane %v1626, 1
        %v1628 = vadd.f32 %v1626, %v1627
        %s1629 = vtos %v1628
        %v1630 = vrcp.pop 1792.0
        %s1631 = vtos %v1630
        %s1632 = smul.f32 %s1629, %s1631
        %v1633 = vstv %s1632
        %v1634 = vsub.f32 %v1613, %v1633
        %v1635 = vsub.f32 %v1614, %v1633
        %v1636 = vmul.f32 %v1634, %v1634
        %v1637 = vmul.f32 %v1635, %v1635
        %v1638 = vsel %vm1237, %v1637, 0.0
        %v1639 = vadd.f32 %v1636, %v1638
        %1640 = vadd.xlane.f32.xlu0 %v1639
        %v1641 = vpop.xlane.xlu0 %1640
        %v1642 = vrot.slane %v1641, 4
        %v1643 = vadd.f32 %v1641, %v1642
        %v1644 = vrot.slane %v1643, 2
        %v1645 = vadd.f32 %v1643, %v1644
        %v1646 = vrot.slane %v1645, 1
        %v1647 = vadd.f32 %v1645, %v1646
        %s1648 = vtos %v1647
        %v1649 = vrcp.pop 1792.0
        %s1650 = vtos %v1649
        %s1651 = smul.f32 %s1648, %s1650
        %s1652 = sadd.f32 %s1651, 1e-08
        %v1653 = vstv %s1652
        %v1654 = vrsqrt.pop %v1653
        %s1655 = vtos %v1654
        %v1656 = vstv %s1655
        %v1657 = vmul.f32 %v1634, %v1656
        %v1658 = vmul.f32 %v1635, %v1656
        %v1660 = vlaneseq
        %v1661 = vshrl.u32 %v1660, 7
        %v1662 = vsub.s32 0, %v1661
        %v1663 = vrot.slane %v1616, %v1662
        %v1665 = vmul.f32 %v1657, %v1663
        %v1666 = vmul.f32 %v1658, %v1663
        %v1668 = vlaneseq
        %v1669 = vshrl.u32 %v1668, 7
        %v1670 = vsub.s32 0, %v1669
        %v1671 = vrot.slane %v1618, %v1670
        %v1673 = vadd.f32 %v1665, %v1671
        %v1674 = vadd.f32 %v1666, %v1671
        %1675 = vst [vmem:[#allocation2] sm:$0xff] 0.0
        %1676 = vst [vmem:[#allocation2 + $0x8] sm:$0xff] 0.0
        %1677 = vst [vmem:[#allocation2 + $0x10] sm:$0x3] 0.0
        %1678 = vst [vmem:[#allocation2 + $0x2] sm:$0xff] %v1673
        %1679 = vst [vmem:[#allocation2 + $0xa] sm:$0x3f] %v1674
        %s1680 = scalar_lea.vmem [#allocation16], 4
        %v1681 = vld [vmem:[%s1680] sm:$0x7]
        %s1682 = scalar_lea.vmem [#allocation18], 1
        %v1683 = vld [vmem:[%s1682] sm:$0x1]
        %v1685 = vlaneseq
        %v1686 = vshrl.u32 %v1685, 7
        %v1687 = vsub.s32 0, %v1686
        %v1688 = vrot.slane %v1683, %v1687
        %v1690 = vadd.f32 %v1688, 0.0
        %v1691 = vld [vmem:[#allocation2] sm:$0xff]
        %v1692 = vld [vmem:[#allocation2 + $0x8] sm:$0x3f]
        %v1693 = vlaneseq
        %v1694 = vshrl.u32 %v1693, 7
        %v1695 = vsub.s32 0, %v1694
        %v1696 = vrot.slane %v1681, %v1695
        %v1697 = vmul.f32 %v1691, %v1696
        %v1698 = vmul.f32 %v1692, %v1696
        %v1699 = vadd.f32 %v1690, %v1697
        %v1700 = vadd.f32 %v1690, %v1698
        %v1701 = vld [vmem:[#allocation2 + $0x2] sm:$0xff]
        %v1702 = vld [vmem:[#allocation2 + $0xa] sm:$0x3f]
        %v1703 = vlaneseq
        %v1704 = vshrl.u32 %v1703, 7
        %v1705 = vsub.s32 1, %v1704
        %v1706 = vrot.slane %v1681, %v1705
        %v1707 = vmul.f32 %v1701, %v1706
        %v1708 = vmul.f32 %v1702, %v1706
        %v1709 = vadd.f32 %v1699, %v1707
        %v1710 = vadd.f32 %v1700, %v1708
        %v1711 = vld [vmem:[#allocation2 + $0x4] sm:$0xff]
        %v1712 = vld [vmem:[#allocation2 + $0xc] sm:$0x3f]
        %v1713 = vlaneseq
        %v1714 = vshrl.u32 %v1713, 7
        %v1715 = vsub.s32 2, %v1714
        %v1716 = vrot.slane %v1681, %v1715
        %v1717 = vmul.f32 %v1711, %v1716
        %v1718 = vmul.f32 %v1712, %v1716
        %v1719 = vadd.f32 %v1709, %v1717
        %v1720 = vadd.f32 %v1710, %v1718
        %vm1721 = vcmp.ge.f32.partialorder %v1719, 0.0
        %vm1722 = vcmp.ge.f32.partialorder %v1720, 0.0
        %v1723 = vstv %s1521
        %v1724 = vmul.f32 %v1723, %v1719
        %v1725 = vmul.f32 %v1723, %v1720
        %v1726 = vsel %vm1721, %v1719, %v1724
        %v1727 = vsel %vm1722, %v1720, %v1725
        %s1728 = scalar_lea.vmem [#allocation19], 1
        %v1729 = vld [vmem:[%s1728] sm:$0x1]
        %s1730 = scalar_lea.vmem [#allocation21], 1
        %v1731 = vld [vmem:[%s1730] sm:$0x1]
        %v1732 = vsel %vm1237, %v1727, 0.0
        %v1733 = vadd.f32 %v1726, %v1732
        %1734 = vadd.xlane.f32.xlu0 %v1733
        %v1735 = vpop.xlane.xlu0 %1734
        %v1736 = vrot.slane %v1735, 4
        %v1737 = vadd.f32 %v1735, %v1736
        %v1738 = vrot.slane %v1737, 2
        %v1739 = vadd.f32 %v1737, %v1738
        %v1740 = vrot.slane %v1739, 1
        %v1741 = vadd.f32 %v1739, %v1740
        %s1742 = vtos %v1741
        %v1743 = vrcp.pop 1792.0
        %s1744 = vtos %v1743
        %s1745 = smul.f32 %s1742, %s1744
        %v1746 = vstv %s1745
        %v1747 = vsub.f32 %v1726, %v1746
        %v1748 = vsub.f32 %v1727, %v1746
        %v1749 = vmul.f32 %v1747, %v1747
        %v1750 = vmul.f32 %v1748, %v1748
        %v1751 = vsel %vm1237, %v1750, 0.0
        %v1752 = vadd.f32 %v1749, %v1751
        %1753 = vadd.xlane.f32.xlu0 %v1752
        %v1754 = vpop.xlane.xlu0 %1753
        %v1755 = vrot.slane %v1754, 4
        %v1756 = vadd.f32 %v1754, %v1755
        %v1757 = vrot.slane %v1756, 2
        %v1758 = vadd.f32 %v1756, %v1757
        %v1759 = vrot.slane %v1758, 1
        %v1760 = vadd.f32 %v1758, %v1759
        %s1761 = vtos %v1760
        %v1762 = vrcp.pop 1792.0
        %s1763 = vtos %v1762
        %s1764 = smul.f32 %s1761, %s1763
        %s1765 = sadd.f32 %s1764, 1e-08
        %v1766 = vstv %s1765
        %v1767 = vrsqrt.pop %v1766
        %s1768 = vtos %v1767
        %v1769 = vstv %s1768
        %v1770 = vmul.f32 %v1747, %v1769
        %v1771 = vmul.f32 %v1748, %v1769
        %v1773 = vlaneseq
        %v1774 = vshrl.u32 %v1773, 7
        %v1775 = vsub.s32 0, %v1774
        %v1776 = vrot.slane %v1729, %v1775
        %v1778 = vmul.f32 %v1770, %v1776
        %v1779 = vmul.f32 %v1771, %v1776
        %v1781 = vlaneseq
        %v1782 = vshrl.u32 %v1781, 7
        %v1783 = vsub.s32 0, %v1782
        %v1784 = vrot.slane %v1731, %v1783
        %v1786 = vadd.f32 %v1778, %v1784
        %v1787 = vadd.f32 %v1779, %v1784
        %v1788 = vpack.c.bf16 %v1787, %v1786
        %s1789 = scalar_lea.vmem %s16, 64
        %v1790 = vld [vmem:[%s1789] sm:$0xf]
        %v1791 = vld [vmem:[%s1789 + $0x4] sm:$0xf]
        %v1792 = vld [vmem:[%s1789 + $0x8] sm:$0xf]
        %v1793 = vld [vmem:[%s1789 + $0xc] sm:$0xf]
        %v1794 = vld [vmem:[%s1789 + $0x10] sm:$0xf]
        %v1795 = vld [vmem:[%s1789 + $0x14] sm:$0xf]
        %v1796 = vld [vmem:[%s1789 + $0x18] sm:$0xf]
        %v1797 = vld [vmem:[%s1789 + $0x1c] sm:$0xf]
        %v1798 = vld [vmem:[%s1789 + $0x20] sm:$0xf]
        %v1799 = vld [vmem:[%s1789 + $0x24] sm:$0xf]
        %v1800 = vld [vmem:[%s1789 + $0x28] sm:$0xf]
        %v1801 = vld [vmem:[%s1789 + $0x2c] sm:$0xf]
        %v1802 = vld [vmem:[%s1789 + $0x30] sm:$0xf]
        %v1803 = vld [vmem:[%s1789 + $0x34] sm:$0xf]
        %v1804 = vld [vmem:[%s1789 + $0x38] sm:$0xf]
        %v1805 = vld [vmem:[%s1789 + $0x3c] sm:$0xf]
        %v1822 = vunpack.c.l.b16 %v1790
        %v1823 = vunpack.c.l.b16 %v1791
        %v1824 = vunpack.c.l.b16 %v1792
        %v1825 = vunpack.c.l.b16 %v1793
        %v1826 = vunpack.c.l.b16 %v1794
        %v1827 = vunpack.c.l.b16 %v1795
        %v1828 = vunpack.c.l.b16 %v1796
        %v1829 = vunpack.c.l.b16 %v1797
        %v1830 = vunpack.c.l.b16 %v1798
        %v1831 = vunpack.c.l.b16 %v1799
        %v1832 = vunpack.c.l.b16 %v1800
        %v1833 = vunpack.c.l.b16 %v1801
        %v1834 = vunpack.c.l.b16 %v1802
        %v1835 = vunpack.c.l.b16 %v1803
        %v1836 = vunpack.c.l.b16 %v1804
        %v1837 = vunpack.c.l.b16 %v1805
        %v1838 = vpack.c.b16 %v1823, %v1822
        %v1839 = vpack.c.b16 %v1825, %v1824
        %v1840 = vpack.c.b16 %v1827, %v1826
        %v1841 = vpack.c.b16 %v1829, %v1828
        %v1842 = vpack.c.b16 %v1831, %v1830
        %v1843 = vpack.c.b16 %v1833, %v1832
        %v1844 = vpack.c.b16 %v1835, %v1834
        %v1845 = vpack.c.b16 %v1837, %v1836
        %1854 = vmatprep.subr.bf16.mxu0 0
        %1855 = vmatpush1.bf16.msra.mxu0 %v1838
        %1856 = vmatprep.subr.bf16.mxu0 0
        %1857 = vmatpush1.bf16.msra.mxu0 %v1839
        %1858 = vmatprep.subr.bf16.mxu0 0
        %1859 = vmatpush1.bf16.msra.mxu0 %v1840
        %1860 = vmatprep.subr.bf16.mxu0 0
        %1861 = vmatpush1.bf16.msra.mxu0 %v1841
        %1862 = vmatprep.subr.bf16.mxu0 0
        %1863 = vmatpush1.bf16.msra.mxu0 %v1842
        %1864 = vmatprep.subr.bf16.mxu0 0
        %1865 = vmatpush1.bf16.msra.mxu0 %v1843
        %1866 = vmatprep.subr.bf16.mxu0 0
        %1867 = vmatpush1.bf16.msra.mxu0 %v1844
        %1868 = vmatprep.subr.bf16.mxu0 0
        %1869 = vmatpush1.bf16.msra.mxu0 %v1845
        %1870 = vmatprep.subr.bf16.mxu0 0
        %1871 = vmatpush1.bf16.msra.mxu0 0
        %1872 = vmatprep.subr.bf16.mxu0 0
        %1873 = vmatpush1.bf16.msra.mxu0 0
        %1874 = vmatprep.subr.bf16.mxu0 0
        %1875 = vmatpush1.bf16.msra.mxu0 0
        %1876 = vmatprep.subr.bf16.mxu0 0
        %1877 = vmatpush1.bf16.msra.mxu0 0
        %1878 = vmatprep.subr.bf16.mxu0 0
        %1879 = vmatpush1.bf16.msra.mxu0 0
        %1880 = vmatprep.subr.bf16.mxu0 0
        %1881 = vmatpush1.bf16.msra.mxu0 0
        %1882 = vmatprep.subr.bf16.mxu0 0
        %1883 = vmatpush1.bf16.msra.mxu0 0
        %1884 = vmatprep.subr.bf16.mxu0 0
        %1885 = vmatpush1.bf16.msra.mxu0 0
        %1886 = vmatprep.mubr.bf16.mxu0 0
        %1887 = vmatmul.mubr.bf16.gmra.mrb[0].mxu0 %v1788
        %v1888 = vpop.f32.mrb[0].mxu0
        %v1889 = vadd.f32 0.0, %v1888
        %v1890 = vpop.f32.mrb[0].mxu0
        %v1891 = vpop.f32.mrb[0].mxu0
        %v1892 = vadd.f32 0.0, %v1891
        %v1893 = vpop.f32.mrb[0].mxu0
        %1894 = vdwg.mxu0
        %v1895 = vadd.f32 %v1518, %v1889
        %v1896 = vadd.f32 %v1519, %v1892
        %s1897 = scalar_lea.vmem [#allocation22], 1
        %v1898 = vld [vmem:[%s1897] sm:$0x1]
        %v1900 = vlaneseq
        %v1901 = vshrl.u32 %v1900, 7
        %v1902 = vsub.s32 0, %v1901
        %v1903 = vrot.slane %v1898, %v1902
        %v1905 = vadd.f32 %v1895, %v1903
        %v1906 = vadd.f32 %v1896, %v1903
        %s1907 = sld [smem:[#allocation3 + $0x100]]
        %vm1908 = vcmp.ge.f32.partialorder %v1905, 0.0
        %vm1909 = vcmp.ge.f32.partialorder %v1906, 0.0
        %v1910 = vstv %s1907
        %v1911 = vmul.f32 %v1910, %v1905
        %v1912 = vmul.f32 %v1910, %v1906
        %v1913 = vsel %vm1908, %v1905, %v1911
        %v1914 = vsel %vm1909, %v1906, %v1912
        %v1915 = vpack.c.bf16 %v1914, %v1913
        %v1916 = vld [vmem:[#allocation24] sm:$0xf]
        %v1917 = vld [vmem:[#allocation24 + $0x4] sm:$0xf]
        %v1918 = vld [vmem:[#allocation24 + $0x8] sm:$0xf]
        %v1919 = vld [vmem:[#allocation24 + $0xc] sm:$0xf]
        %v1920 = vld [vmem:[#allocation24 + $0x10] sm:$0xf]
        %v1921 = vld [vmem:[#allocation24 + $0x14] sm:$0xf]
        %v1922 = vld [vmem:[#allocation24 + $0x18] sm:$0xf]
        %v1923 = vld [vmem:[#allocation24 + $0x1c] sm:$0xf]
        %v1924 = vld [vmem:[#allocation25] sm:$0x1]
        %v1926 = vlaneseq
        %v1927 = vshrl.u32 %v1926, 7
        %v1928 = vsub.s32 0, %v1927
        %v1929 = vrot.slane %v1924, %v1928
        %v1939 = vunpack.c.l.b16 %v1916
        %v1940 = vunpack.c.l.b16 %v1917
        %v1941 = vunpack.c.l.b16 %v1918
        %v1942 = vunpack.c.l.b16 %v1919
        %v1943 = vunpack.c.l.b16 %v1920
        %v1944 = vunpack.c.l.b16 %v1921
        %v1945 = vunpack.c.l.b16 %v1922
        %v1946 = vunpack.c.l.b16 %v1923
        %v1947 = vpack.c.b16 %v1940, %v1939
        %v1948 = vpack.c.b16 %v1942, %v1941
        %v1949 = vpack.c.b16 %v1944, %v1943
        %v1950 = vpack.c.b16 %v1946, %v1945
        %v1956 = vsel %vm998, %v1915, 0
        %1958 = vmatprep.subr.bf16.mxu0 0
        %1959 = vmatpush1.bf16.msra.mxu0 %v1947
        %1960 = vmatprep.subr.bf16.mxu0 0
        %1961 = vmatpush1.bf16.msra.mxu0 %v1948
        %1962 = vmatprep.subr.bf16.mxu0 0
        %1963 = vmatpush1.bf16.msra.mxu0 %v1949
        %1964 = vmatprep.subr.bf16.mxu0 0
        %1965 = vmatpush1.bf16.msra.mxu0 %v1950
        %1966 = vmatprep.subr.bf16.mxu0 0
        %1967 = vmatpush1.bf16.msra.mxu0 0
        %1968 = vmatprep.subr.bf16.mxu0 0
        %1969 = vmatpush1.bf16.msra.mxu0 0
        %1970 = vmatprep.subr.bf16.mxu0 0
        %1971 = vmatpush1.bf16.msra.mxu0 0
        %1972 = vmatprep.subr.bf16.mxu0 0
        %1973 = vmatpush1.bf16.msra.mxu0 0
        %1974 = vmatprep.subr.bf16.mxu0 0
        %1975 = vmatpush1.bf16.msra.mxu0 0
        %1976 = vmatprep.subr.bf16.mxu0 0
        %1977 = vmatpush1.bf16.msra.mxu0 0
        %1978 = vmatprep.subr.bf16.mxu0 0
        %1979 = vmatpush1.bf16.msra.mxu0 0
        %1980 = vmatprep.subr.bf16.mxu0 0
        %1981 = vmatpush1.bf16.msra.mxu0 0
        %1982 = vmatprep.subr.bf16.mxu0 0
        %1983 = vmatpush1.bf16.msra.mxu0 0
        %1984 = vmatprep.subr.bf16.mxu0 0
        %1985 = vmatpush1.bf16.msra.mxu0 0
        %1986 = vmatprep.subr.bf16.mxu0 0
        %1987 = vmatpush1.bf16.msra.mxu0 0
        %1988 = vmatprep.subr.bf16.mxu0 0
        %1989 = vmatpush1.bf16.msra.mxu0 0
        %1990 = vmatprep.mubr.bf16.mxu0 0
        %1991 = vmatmul.mubr.bf16.gmra.mrb[0].mxu0 %v1956
        %v1992 = vpop.f32.mrb[0].mxu0
        %v1993 = vadd.f32 %v1929, %v1992
        %v1994 = vpop.f32.mrb[0].mxu0
        %v1995 = vpop.f32.mrb[0].mxu0
        %v1996 = vadd.f32 %v1929, %v1995
        %v1997 = vpop.f32.mrb[0].mxu0
        %1998 = vdwg.mxu0
        %v1999 = vxor.u32 %v1993, 2147483648
        %v2000 = vxor.u32 %v1996, 2147483648
        %v2001 = vmul.f32 %v1999, 1.442695
        %v2002 = vpow.pop %v2001
        %v2003 = vmul.f32 %v2000, 1.442695
        %v2004 = vpow.pop %v2003
        %v2005 = vadd.f32 %v2002, 1.0
        %v2006 = vadd.f32 %v2004, 1.0
        %v2007 = vrcp.pop %v2005
        %v2008 = vmul.f32 1.0, %v2007
        %v2009 = vrcp.pop %v2006
        %v2010 = vmul.f32 1.0, %v2009
        %v2011 = vmul.f32 %v990, %v2008
        %v2012 = vmul.f32 %v993, %v2010
        %v2013 = vpack.c.bf16 %v2012, %v2011
        %v2014 = vld [vmem:[#allocation27] sm:$0xf]
        %v2015 = vld [vmem:[#allocation27 + $0x4] sm:$0xf]
        %v2016 = vld [vmem:[#allocation27 + $0x8] sm:$0xf]
        %v2017 = vld [vmem:[#allocation27 + $0xc] sm:$0xf]
        %v2018 = vld [vmem:[#allocation27 + $0x10] sm:$0xf]
        %v2019 = vld [vmem:[#allocation27 + $0x14] sm:$0xf]
        %v2020 = vld [vmem:[#allocation27 + $0x18] sm:$0xf]
        %v2021 = vld [vmem:[#allocation27 + $0x1c] sm:$0xf]
        %v2030 = vunpack.c.l.b16 %v2014
        %v2031 = vunpack.c.l.b16 %v2015
        %v2032 = vunpack.c.l.b16 %v2016
        %v2033 = vunpack.c.l.b16 %v2017
        %v2034 = vunpack.c.l.b16 %v2018
        %v2035 = vunpack.c.l.b16 %v2019
        %v2036 = vunpack.c.l.b16 %v2020
        %v2037 = vunpack.c.l.b16 %v2021
        %v2038 = vpack.c.b16 %v2031, %v2030
        %v2039 = vpack.c.b16 %v2033, %v2032
        %v2040 = vpack.c.b16 %v2035, %v2034
        %v2041 = vpack.c.b16 %v2037, %v2036
        %v2047 = vsel %vm998, %v2013, 0
        %2049 = vmatprep.subr.bf16.mxu0 0
        %2050 = vmatpush1.bf16.msra.mxu0 %v2038
        %2051 = vmatprep.subr.bf16.mxu0 0
        %2052 = vmatpush1.bf16.msra.mxu0 %v2039
        %2053 = vmatprep.subr.bf16.mxu0 0
        %2054 = vmatpush1.bf16.msra.mxu0 %v2040
        %2055 = vmatprep.subr.bf16.mxu0 0
        %2056 = vmatpush1.bf16.msra.mxu0 %v2041
        %2057 = vmatprep.subr.bf16.mxu0 0
        %2058 = vmatpush1.bf16.msra.mxu0 0
        %2059 = vmatprep.subr.bf16.mxu0 0
        %2060 = vmatpush1.bf16.msra.mxu0 0
        %2061 = vmatprep.subr.bf16.mxu0 0
        %2062 = vmatpush1.bf16.msra.mxu0 0
        %2063 = vmatprep.subr.bf16.mxu0 0
        %2064 = vmatpush1.bf16.msra.mxu0 0
        %2065 = vmatprep.subr.bf16.mxu0 0
        %2066 = vmatpush1.bf16.msra.mxu0 0
        %2067 = vmatprep.subr.bf16.mxu0 0
        %2068 = vmatpush1.bf16.msra.mxu0 0
        %2069 = vmatprep.subr.bf16.mxu0 0
        %2070 = vmatpush1.bf16.msra.mxu0 0
        %2071 = vmatprep.subr.bf16.mxu0 0
        %2072 = vmatpush1.bf16.msra.mxu0 0
        %2073 = vmatprep.subr.bf16.mxu0 0
        %2074 = vmatpush1.bf16.msra.mxu0 0
        %2075 = vmatprep.subr.bf16.mxu0 0
        %2076 = vmatpush1.bf16.msra.mxu0 0
        %2077 = vmatprep.subr.bf16.mxu0 0
        %2078 = vmatpush1.bf16.msra.mxu0 0
        %2079 = vmatprep.subr.bf16.mxu0 0
        %2080 = vmatpush1.bf16.msra.mxu0 0
        %2081 = vmatprep.mubr.bf16.mxu0 0
        %2082 = vmatmul.mubr.bf16.gmra.mrb[0].mxu0 %v2047
        %v2083 = vpop.f32.mrb[0].mxu0
        %v2084 = vadd.f32 0.0, %v2083
        %v2085 = vpop.f32.mrb[0].mxu0
        %v2086 = vpop.f32.mrb[0].mxu0
        %v2087 = vadd.f32 0.0, %v2086
        %v2088 = vpop.f32.mrb[0].mxu0
        %2089 = vdwg.mxu0
        %vm2090 = vcmask 261120
        %2091 = vst.msk [vmem:[%s880] sm:$0xff] %vm2090, %v2084
        %vm2092 = vcmask 259072
        %2093 = vst.msk [vmem:[%s880 + $0x8] sm:$0x3f] %vm2092, %v2087
        %2096 = vrot.lane.b32.xlu0 %v2008, 64
        %v2097 = vpop.permute.xlu0 %2096
        %2098 = vrot.lane.b32.xlu0 %v2010, 64
        %v2099 = vpop.permute.xlu0 %2098
        %v2102 = vmul.f32 %v990, %v2097
        %v2103 = vmul.f32 %v993, %v2099
        %v2104 = vpack.c.bf16 %v2103, %v2102
        %v2105 = vld [vmem:[#allocation27] sm:$0xf]
        %v2106 = vld [vmem:[#allocation27 + $0x4] sm:$0xf]
        %v2107 = vld [vmem:[#allocation27 + $0x8] sm:$0xf]
        %v2108 = vld [vmem:[#allocation27 + $0xc] sm:$0xf]
        %v2109 = vld [vmem:[#allocation27 + $0x10] sm:$0xf]
        %v2110 = vld [vmem:[#allocation27 + $0x14] sm:$0xf]
        %v2111 = vld [vmem:[#allocation27 + $0x18] sm:$0xf]
        %v2112 = vld [vmem:[#allocation27 + $0x1c] sm:$0xf]
        %v2121 = vunpack.c.l.b16 %v2105
        %v2122 = vunpack.c.l.b16 %v2106
        %v2123 = vunpack.c.l.b16 %v2107
        %v2124 = vunpack.c.l.b16 %v2108
        %v2125 = vunpack.c.l.b16 %v2109
        %v2126 = vunpack.c.l.b16 %v2110
        %v2127 = vunpack.c.l.b16 %v2111
        %v2128 = vunpack.c.l.b16 %v2112
        %v2129 = vpack.c.b16 %v2122, %v2121
        %v2130 = vpack.c.b16 %v2124, %v2123
        %v2131 = vpack.c.b16 %v2126, %v2125
        %v2132 = vpack.c.b16 %v2128, %v2127
        %v2138 = vsel %vm998, %v2104, 0
        %2140 = vmatprep.subr.bf16.mxu0 0
        %2141 = vmatpush1.bf16.msra.mxu0 %v2129
        %2142 = vmatprep.subr.bf16.mxu0 0
        %2143 = vmatpush1.bf16.msra.mxu0 %v2130
        %2144 = vmatprep.subr.bf16.mxu0 0
        %2145 = vmatpush1.bf16.msra.mxu0 %v2131
        %2146 = vmatprep.subr.bf16.mxu0 0
        %2147 = vmatpush1.bf16.msra.mxu0 %v2132
        %2148 = vmatprep.subr.bf16.mxu0 0
        %2149 = vmatpush1.bf16.msra.mxu0 0
        %2150 = vmatprep.subr.bf16.mxu0 0
        %2151 = vmatpush1.bf16.msra.mxu0 0
        %2152 = vmatprep.subr.bf16.mxu0 0
        %2153 = vmatpush1.bf16.msra.mxu0 0
        %2154 = vmatprep.subr.bf16.mxu0 0
        %2155 = vmatpush1.bf16.msra.mxu0 0
        %2156 = vmatprep.subr.bf16.mxu0 0
        %2157 = vmatpush1.bf16.msra.mxu0 0
        %2158 = vmatprep.subr.bf16.mxu0 0
        %2159 = vmatpush1.bf16.msra.mxu0 0
        %2160 = vmatprep.subr.bf16.mxu0 0
        %2161 = vmatpush1.bf16.msra.mxu0 0
        %2162 = vmatprep.subr.bf16.mxu0 0
        %2163 = vmatpush1.bf16.msra.mxu0 0
        %2164 = vmatprep.subr.bf16.mxu0 0
        %2165 = vmatpush1.bf16.msra.mxu0 0
        %2166 = vmatprep.subr.bf16.mxu0 0
        %2167 = vmatpush1.bf16.msra.mxu0 0
        %2168 = vmatprep.subr.bf16.mxu0 0
        %2169 = vmatpush1.bf16.msra.mxu0 0
        %2170 = vmatprep.subr.bf16.mxu0 0
        %2171 = vmatpush1.bf16.msra.mxu0 0
        %2172 = vmatprep.mubr.bf16.mxu0 0
        %2173 = vmatmul.mubr.bf16.gmra.mrb[0].mxu0 %v2138
        %v2174 = vpop.f32.mrb[0].mxu0
        %v2175 = vadd.f32 0.0, %v2174
        %v2176 = vpop.f32.mrb[0].mxu0
        %v2177 = vpop.f32.mrb[0].mxu0
        %v2178 = vadd.f32 0.0, %v2177
        %v2179 = vpop.f32.mrb[0].mxu0
        %2180 = vdwg.mxu0
        %s2181 = scalar_lea.vmem %s880, 16
        %2182 = vst.msk [vmem:[%s2181] sm:$0xff] %vm2090, %v2175
        %2183 = vst.msk [vmem:[%s2181 + $0x8] sm:$0x3f] %vm2092, %v2178
        %p2184 = scmp.lt.s32.totalorder %s41, 1
        %s2185 = scalar_select %p2184, %s41, 1
        %s2186 = smul.addr %s2185, 4
        %s2187 = smul.addr %s2186, 8
        %s2188 = scalar_lea.vmem %s21, %s2187
        // Predicated region
        $region169: #{run.1} parent=103 // pred_check
          %p2189 = pneg %p505
        $region170: #{run.1} parent=103 // pred_check_branch
          %2191 = sbr.rel (%p2189) target = $region172
        $region171: #{run.1} parent=103 // pred_region
          _
        $region172: #{run.1} parent=103 // pred_fallthru
          _
      $region104: #{run.1} parent=5 // pred_fallthru
        _
      %p2192 = scmp.le.s32.totalorder 2, %s36
      // Predicated region
      $region173: #{run.1} parent=5 // pred_check
        %p2193 = pneg %p2192
      $region174: #{run.1} parent=5 // pred_check_branch
        %2195 = sbr.rel (%p2193) target = $region176
      $region175: #{run.1} parent=5 // pred_region
        %s2196 = ssub.s32 %s36, 2
        // Predicated region
        $region177: #{run.1} parent=175 // pred_check
          %p2197 = pneg %p511
        $region178: #{run.1} parent=175 // pred_check_branch
          %2199 = sbr.rel (%p2197) target = $region180
        $region179: #{run.1} parent=175 // pred_region
          %p2200 = scmp.lt.s32.totalorder %s42, 1
          %s2201 = scalar_select %p2200, %s42, 1
          %s2202 = smul.addr %s2201, 4
          %s2203 = smul.addr %s2202, 8
          %s2204 = scalar_lea.vmem %s21, %s2203
        $region180: #{run.1} parent=175 // pred_fallthru
          _
      $region176: #{run.1} parent=5 // pred_fallthru
        _
    $region6: #{run.1} parent=1 // loop_footer
      %s40 = sadd.s32 1, %s36
    $region7: #{run.1} parent=1 // loop_footer_branch
      %35 = sbr.rel target = $region3
    $region8: #{run.1} parent=1 // loop_exit
      _
    %2205 = vsyncpa [#allocation4], 1
    %s2206 = scalar_lea.sflag [#allocation4], 1
    %2207 = vsyncpa %s2206, 1
    %2208 = vsyncpa [#allocation8], 1
    %2209 = vsyncpa [#allocation11], 1
    %2210 = vsyncpa [#allocation14], 1
    %2211 = vsyncpa [#allocation17], 1
    %2212 = vsyncpa [#allocation20], 1
    %2213 = vsyncpa [#allocation23], 1
    %2214 = vsyncpa [#allocation26], 1
    %2215 = vsyncpa [#allocation5], 1
    %s2216 = scalar_lea.sflag [#allocation5], 1
    %2217 = vsyncpa %s2216, 1

</llo_original>
